<compile_context>
chip_gen: v5e
topology: v5e:2x2
jax: 0.10.0
libtpu: 0.0.40
codegen_flags: <defaults>
</compile_context>

<pallas_src>
import math

import jax
import jax.numpy as jnp
import numpy as np
from jax.experimental import pallas as pl
from jax.experimental.pallas import tpu as pltpu


# ---------------------------------------------------------------------------
# Small test configuration of the module (ctx_dim=768 in the paper config;
# 128 keeps the test small while staying lane-dense on TPU).
# ---------------------------------------------------------------------------
CTX_DIM = 128
NUM_HEADS = 8
HEAD_DIM = CTX_DIM // NUM_HEADS
HIDDEN = CTX_DIM // 4          # bottleneck of scale / shift / mlp two-layer MLPs
N_CTX = 8                      # prompt context length
N_PATCH = 16                   # patch tokens per feature level
N_LEVELS = 4                   # Conv2d(4, 1, 1) -> 4 stacked patch-feature levels
BATCH = 2
_LN_EPS = 1e-5


# ---------------------------------------------------------------------------
# Fused forward kernel (runs once, no grid: everything fits VMEM trivially).
# ---------------------------------------------------------------------------
def _prompt_modulator_kernel(
    # activations
    ctx_ref,        # (L, D)      prompt context
    imf_ref,        # (B, D)      global image features
    pf_ref,         # (4, B, P, D) stacked patch-feature levels
    pwb_ref,        # (5,) SMEM   [w0, w1, w2, w3, bias] of Conv2d(4, 1, 1)
    # scale MLP
    w1s_ref, b1s_ref, w2s_ref, b2s_ref,
    # shift MLP
    w1f_ref, b1f_ref, w2f_ref, b2f_ref,
    # cross attention (Q from modulated ctx, K/V from weighted patches)
    wq_ref, bq_ref, wk_ref, bk_ref, wv_ref, bv_ref, wo_ref, bo_ref,
    # LayerNorm after attention
    g1_ref, be1_ref,
    # MLP
    w1m_ref, b1m_ref, w2m_ref, b2m_ref,
    # final LayerNorm
    g2_ref, be2_ref,
    # output
    out_ref,        # (L, D)
):
    f32 = jnp.float32
    ctx = ctx_ref[...].astype(f32)          # (L, D)
    imf = imf_ref[...].astype(f32)          # (B, D)
    L, D = ctx.shape
    B = imf.shape[0]
    P = pf_ref.shape[2]
    H, hd = NUM_HEADS, HEAD_DIM

    def linear(x, w_ref, b_ref):
        return (jnp.dot(x, w_ref[...].astype(f32), preferred_element_type=f32)
                + b_ref[...].astype(f32))

    def layernorm(x, g_ref, b_ref):
        mu = jnp.mean(x, axis=-1, keepdims=True)
        xc = x - mu
        var = jnp.mean(xc * xc, axis=-1, keepdims=True)
        inv = jax.lax.rsqrt(var + _LN_EPS)
        return xc * inv * g_ref[...].astype(f32) + b_ref[...].astype(f32)

    # --- FiLM modulation of the prompt context ------------------------------
    scale = linear(jnp.maximum(linear(imf, w1s_ref, b1s_ref), 0.0),
                   w2s_ref, b2s_ref)                                  # (B, D)
    shift = linear(jnp.maximum(linear(imf, w1f_ref, b1f_ref), 0.0),
                   w2f_ref, b2f_ref)                                  # (B, D)
    mod = scale[:, None, :] * ctx[None, :, :] + shift[:, None, :]     # (B, L, D)
    modf = mod.reshape(B * L, D)                   # lane-dense M = B*L rows

    # --- 1x1 Conv2d(4, 1, 1) across the stacked patch-feature levels --------
    pf_w = pwb_ref[0] * pf_ref[0].astype(f32)
    for i in range(1, N_LEVELS):
        pf_w = pf_w + pwb_ref[i] * pf_ref[i].astype(f32)
    pf_w = pf_w + pwb_ref[N_LEVELS]                                   # (B, P, D)

    # --- multi-head cross attention ------------------------------------------
    q = linear(modf, wq_ref, bq_ref).reshape(B, L, D)
    kvf = pf_w.reshape(B * P, D)
    k = linear(kvf, wk_ref, bk_ref).reshape(B, P, D)
    v = linear(kvf, wv_ref, bv_ref).reshape(B, P, D)

    inv_sqrt_hd = 1.0 / math.sqrt(hd)
    head_outs = []
    for h in range(H):                       # static unroll over heads
        lo = h * hd
        qh = q[:, :, lo:lo + hd]             # (B, L, hd)
        kh = k[:, :, lo:lo + hd]             # (B, P, hd)
        vh = v[:, :, lo:lo + hd]             # (B, P, hd)
        s = jnp.einsum("bld,bpd->blp", qh, kh,
                       preferred_element_type=f32) * inv_sqrt_hd      # (B, L, P)
        s = s - jnp.max(s, axis=-1, keepdims=True)
        p = jnp.exp(s)
        p = p / jnp.sum(p, axis=-1, keepdims=True)
        head_outs.append(jnp.einsum("blp,bpd->bld", p, vh,
                                    preferred_element_type=f32))      # (B, L, hd)
    attn = jnp.concatenate(head_outs, axis=-1).reshape(B * L, D)
    attn = linear(attn, wo_ref, bo_ref)                               # out_proj

    # --- residual + LN, MLP, residual + LN -----------------------------------
    x1 = layernorm(attn + modf, g1_ref, be1_ref)
    m = linear(jnp.maximum(linear(x1, w1m_ref, b1m_ref), 0.0),
               w2m_ref, b2m_ref)
    x2 = layernorm(m + x1, g2_ref, be2_ref)                           # (B*L, D)

    # --- mean over the batch dim (dim=0 of (B, L, D)) ------------------------
    acc = x2[0:L, :]
    for b in range(1, B):
        acc = acc + x2[b * L:(b + 1) * L, :]
    out_ref[...] = (acc * (1.0 / B)).astype(out_ref.dtype)


# ---------------------------------------------------------------------------
# Wrapper.
# ---------------------------------------------------------------------------
_VMEM = pl.BlockSpec(memory_space=pltpu.MemorySpace.VMEM)
_SMEM = pl.BlockSpec(memory_space=pltpu.MemorySpace.SMEM)

_WEIGHT_ORDER = (
    "w1s", "b1s", "w2s", "b2s",
    "w1f", "b1f", "w2f", "b2f",
    "wq", "bq", "wk", "bk", "wv", "bv", "wo", "bo",
    "g1", "be1",
    "w1m", "b1m", "w2m", "b2m",
    "g2", "be2",
)


@jax.jit
def prompt_modulator_with_attention(ctx, im_features, patch_features, params):
    """Forward of PromptModulatorWithAttention.

    ctx:            (1, n_ctx, D)
    im_features:    (B, D)
    patch_features: tuple/list of 4 arrays, each (B, P, D)
    returns:        (1, 1, n_ctx, D)
    """
    pf = jnp.stack(patch_features, axis=0)                # (4, B, P, D)
    L, D = ctx.shape[-2], ctx.shape[-1]
    ctx2 = ctx.reshape(L, D)
    weights = [params[k] for k in _WEIGHT_ORDER]
    out = pl.pallas_call(
        _prompt_modulator_kernel,
        out_shape=jax.ShapeDtypeStruct((L, D), jnp.float32),
        in_specs=[_VMEM, _VMEM, _VMEM, _SMEM] + [_VMEM] * len(weights),
        out_specs=_VMEM,
    )(ctx2, im_features, pf, params["pwb"], *weights)
    return out[None, None]                                # (1, 1, n_ctx, D)


# ---------------------------------------------------------------------------
# Deterministic synthetic parameters (same layout the kernel consumes:
# weights stored for right-multiply, i.e. transposed vs. PyTorch Linear).
# ---------------------------------------------------------------------------
def make_params(key, ctx_dim=CTX_DIM):
    hid = ctx_dim // 4
    keys = iter(jax.random.split(key, 32))

    def lin(fan_in, fan_out):
        return jax.random.normal(next(keys), (fan_in, fan_out),
                                 jnp.float32) / np.sqrt(fan_in)

    def bias(n):
        return 0.02 * jax.random.normal(next(keys), (1, n), jnp.float32)

    pw_w = jax.random.normal(next(keys), (N_LEVELS,), jnp.float32) / np.sqrt(N_LEVELS)
    pw_b = 0.02 * jax.random.normal(next(keys), (1,), jnp.float32)

    return {
        "pwb": jnp.concatenate([pw_w, pw_b]),             # (5,) -> SMEM
        "w1s": lin(ctx_dim, hid), "b1s": bias(hid),
        "w2s": lin(hid, ctx_dim), "b2s": bias(ctx_dim),
        "w1f": lin(ctx_dim, hid), "b1f": bias(hid),
        "w2f": lin(hid, ctx_dim), "b2f": bias(ctx_dim),
        "wq": lin(ctx_dim, ctx_dim), "bq": bias(ctx_dim),
        "wk": lin(ctx_dim, ctx_dim), "bk": bias(ctx_dim),
        "wv": lin(ctx_dim, ctx_dim), "bv": bias(ctx_dim),
        "wo": lin(ctx_dim, ctx_dim), "bo": bias(ctx_dim),
        "g1": jnp.ones((1, ctx_dim), jnp.float32),
        "be1": jnp.zeros((1, ctx_dim), jnp.float32),
        "w1m": lin(ctx_dim, hid), "b1m": bias(hid),
        "w2m": lin(hid, ctx_dim), "b2m": bias(ctx_dim),
        "g2": jnp.ones((1, ctx_dim), jnp.float32),
        "be2": jnp.zeros((1, ctx_dim), jnp.float32),
    }


# ---------------------------------------------------------------------------
# Pure-jnp reference (mirrors the PyTorch forward exactly).
# ---------------------------------------------------------------------------
def reference_forward(ctx, im_features, patch_features, params):
    D = ctx.shape[-1]
    H, hd = NUM_HEADS, D // NUM_HEADS

    def mlp2(x, w1, b1, w2, b2):
        return jnp.maximum(x @ w1 + b1, 0.0) @ w2 + b2

    def layernorm(x, g, b):
        mu = jnp.mean(x, axis=-1, keepdims=True)
        var = jnp.mean((x - mu) ** 2, axis=-1, keepdims=True)
        return (x - mu) / jnp.sqrt(var + _LN_EPS) * g + b

    scale = mlp2(im_features, params["w1s"], params["b1s"],
                 params["w2s"], params["b2s"])[:, None, None, :]      # (B,1,1,D)
    shift = mlp2(im_features, params["w1f"], params["b1f"],
                 params["w2f"], params["b2f"])[:, None, None, :]
    mod = scale * ctx + shift                                         # (B,1,L,D)
    mod = jnp.transpose(mod, (1, 0, 2, 3))[0]                         # (B,L,D)

    pf = jnp.stack(patch_features, axis=0)                            # (4,B,P,D)
    pf = jnp.transpose(pf, (1, 0, 2, 3))                              # (B,4,P,D)
    pf_w = (jnp.einsum("f,bfpd->bpd", params["pwb"][:N_LEVELS], pf)
            + params["pwb"][N_LEVELS])                                # (B,P,D)

    B, L, _ = mod.shape
    P = pf_w.shape[1]
    q = (mod @ params["wq"] + params["bq"]).reshape(B, L, H, hd).transpose(0, 2, 1, 3)
    k = (pf_w @ params["wk"] + params["bk"]).reshape(B, P, H, hd).transpose(0, 2, 1, 3)
    v = (pf_w @ params["wv"] + params["bv"]).reshape(B, P, H, hd).transpose(0, 2, 1, 3)
    s = jnp.einsum("bhld,bhpd->bhlp", q, k) / np.sqrt(hd)
    a = jax.nn.softmax(s, axis=-1)
    o = jnp.einsum("bhlp,bhpd->bhld", a, v).transpose(0, 2, 1, 3).reshape(B, L, D)
    attn = o @ params["wo"] + params["bo"]

    x1 = layernorm(attn + mod, params["g1"], params["be1"])
    m = mlp2(x1, params["w1m"], params["b1m"], params["w2m"], params["b2m"])
    x2 = layernorm(m + x1, params["g2"], params["be2"])
    return x2.mean(axis=0, keepdims=True)[None]                       # (1,1,L,D)


if __name__ == "__main__":
    key = jax.random.PRNGKey(0)
    k_ctx, k_im, k_pf, k_par = jax.random.split(key, 4)

    ctx = 0.1 * jax.random.normal(k_ctx, (1, N_CTX, CTX_DIM), jnp.float32)
    im_features = jax.random.normal(k_im, (BATCH, CTX_DIM), jnp.float32)
    patch_features = tuple(
        jax.random.normal(pk, (BATCH, N_PATCH, CTX_DIM), jnp.float32)
        for pk in jax.random.split(k_pf, N_LEVELS))
    params = make_params(k_par)

    out = prompt_modulator_with_attention(ctx, im_features, patch_features, params)
    out = jax.block_until_ready(out)

    assert out.shape == (1, 1, N_CTX, CTX_DIM), out.shape
    assert bool(jnp.all(jnp.isfinite(out)))

    ref = reference_forward(ctx, im_features, patch_features, params)
    np.testing.assert_allclose(np.asarray(out), np.asarray(ref),
                               rtol=2e-2, atol=2e-2)

    print("KERNEL_OK")
</pallas_src>

<mosaic_0001>
module attributes {stable_mosaic.version = 11 : i64} {
  func.func @_prompt_modulator_kernel(%arg0: memref<8x128xf32, #tpu.memory_space<vmem>>, %arg1: memref<2x128xf32, #tpu.memory_space<vmem>>, %arg2: memref<4x2x16x128xf32, #tpu.memory_space<vmem>>, %arg3: memref<5xf32, #tpu.memory_space<smem>>, %arg4: memref<128x32xf32, #tpu.memory_space<vmem>>, %arg5: memref<1x32xf32, #tpu.memory_space<vmem>>, %arg6: memref<32x128xf32, #tpu.memory_space<vmem>>, %arg7: memref<1x128xf32, #tpu.memory_space<vmem>>, %arg8: memref<128x32xf32, #tpu.memory_space<vmem>>, %arg9: memref<1x32xf32, #tpu.memory_space<vmem>>, %arg10: memref<32x128xf32, #tpu.memory_space<vmem>>, %arg11: memref<1x128xf32, #tpu.memory_space<vmem>>, %arg12: memref<128x128xf32, #tpu.memory_space<vmem>>, %arg13: memref<1x128xf32, #tpu.memory_space<vmem>>, %arg14: memref<128x128xf32, #tpu.memory_space<vmem>>, %arg15: memref<1x128xf32, #tpu.memory_space<vmem>>, %arg16: memref<128x128xf32, #tpu.memory_space<vmem>>, %arg17: memref<1x128xf32, #tpu.memory_space<vmem>>, %arg18: memref<128x128xf32, #tpu.memory_space<vmem>>, %arg19: memref<1x128xf32, #tpu.memory_space<vmem>>, %arg20: memref<1x128xf32, #tpu.memory_space<vmem>>, %arg21: memref<1x128xf32, #tpu.memory_space<vmem>>, %arg22: memref<128x32xf32, #tpu.memory_space<vmem>>, %arg23: memref<1x32xf32, #tpu.memory_space<vmem>>, %arg24: memref<32x128xf32, #tpu.memory_space<vmem>>, %arg25: memref<1x128xf32, #tpu.memory_space<vmem>>, %arg26: memref<1x128xf32, #tpu.memory_space<vmem>>, %arg27: memref<1x128xf32, #tpu.memory_space<vmem>>, %arg28: memref<8x128xf32, #tpu.memory_space<vmem>>) attributes {dimension_semantics = [], scalar_prefetch = 0 : i64, scratch_operands = 0 : i64, tpu.core_type = #tpu.core_type<tc>} {
    %c0 = arith.constant 0 : index
    %c0_0 = arith.constant 0 : index
    %0 = vector.load %arg0[%c0, %c0_0] : memref<8x128xf32, #tpu.memory_space<vmem>>, vector<8x128xf32>
    %c0_1 = arith.constant 0 : index
    %c0_2 = arith.constant 0 : index
    %1 = vector.load %arg1[%c0_1, %c0_2] : memref<2x128xf32, #tpu.memory_space<vmem>>, vector<2x128xf32>
    %c0_3 = arith.constant 0 : index
    %c0_4 = arith.constant 0 : index
    %2 = vector.load %arg4[%c0_3, %c0_4] : memref<128x32xf32, #tpu.memory_space<vmem>>, vector<128x32xf32>
    %cst = arith.constant dense<0.000000e+00> : vector<2x32xf32>
    %3 = tpu.matmul %1, %2, %cst {dimension_numbers = #tpu.dot_dimension_numbers<[1], [0], [0], [1], [0, 0, 1, 1], [], []>} : vector<2x128xf32>, vector<128x32xf32>, vector<2x32xf32> -> vector<2x32xf32>
    %c0_5 = arith.constant 0 : index
    %c0_6 = arith.constant 0 : index
    %4 = vector.load %arg5[%c0_5, %c0_6] : memref<1x32xf32, #tpu.memory_space<vmem>>, vector<1x32xf32>
    %5 = vector.broadcast %4 : vector<1x32xf32> to vector<2x32xf32>
    %6 = arith.addf %3, %5 : vector<2x32xf32>
    %cst_7 = arith.constant 0.000000e+00 : f32
    %7 = vector.broadcast %cst_7 : f32 to vector<2x32xf32>
    %8 = arith.maximumf %6, %7 : vector<2x32xf32>
    %c0_8 = arith.constant 0 : index
    %c0_9 = arith.constant 0 : index
    %9 = vector.load %arg6[%c0_8, %c0_9] : memref<32x128xf32, #tpu.memory_space<vmem>>, vector<32x128xf32>
    %cst_10 = arith.constant dense<0.000000e+00> : vector<2x128xf32>
    %10 = tpu.matmul %8, %9, %cst_10 {dimension_numbers = #tpu.dot_dimension_numbers<[1], [0], [0], [1], [0, 0, 1, 1], [], []>} : vector<2x32xf32>, vector<32x128xf32>, vector<2x128xf32> -> vector<2x128xf32>
    %c0_11 = arith.constant 0 : index
    %c0_12 = arith.constant 0 : index
    %11 = vector.load %arg7[%c0_11, %c0_12] : memref<1x128xf32, #tpu.memory_space<vmem>>, vector<1x128xf32>
    %12 = vector.broadcast %11 : vector<1x128xf32> to vector<2x128xf32>
    %13 = arith.addf %10, %12 : vector<2x128xf32>
    %c0_13 = arith.constant 0 : index
    %c0_14 = arith.constant 0 : index
    %14 = vector.load %arg8[%c0_13, %c0_14] : memref<128x32xf32, #tpu.memory_space<vmem>>, vector<128x32xf32>
    %cst_15 = arith.constant dense<0.000000e+00> : vector<2x32xf32>
    %15 = tpu.matmul %1, %14, %cst_15 {dimension_numbers = #tpu.dot_dimension_numbers<[1], [0], [0], [1], [0, 0, 1, 1], [], []>} : vector<2x128xf32>, vector<128x32xf32>, vector<2x32xf32> -> vector<2x32xf32>
    %c0_16 = arith.constant 0 : index
    %c0_17 = arith.constant 0 : index
    %16 = vector.load %arg9[%c0_16, %c0_17] : memref<1x32xf32, #tpu.memory_space<vmem>>, vector<1x32xf32>
    %17 = vector.broadcast %16 : vector<1x32xf32> to vector<2x32xf32>
    %18 = arith.addf %15, %17 : vector<2x32xf32>
    %cst_18 = arith.constant 0.000000e+00 : f32
    %19 = vector.broadcast %cst_18 : f32 to vector<2x32xf32>
    %20 = arith.maximumf %18, %19 : vector<2x32xf32>
    %c0_19 = arith.constant 0 : index
    %c0_20 = arith.constant 0 : index
    %21 = vector.load %arg10[%c0_19, %c0_20] : memref<32x128xf32, #tpu.memory_space<vmem>>, vector<32x128xf32>
    %cst_21 = arith.constant dense<0.000000e+00> : vector<2x128xf32>
    %22 = tpu.matmul %20, %21, %cst_21 {dimension_numbers = #tpu.dot_dimension_numbers<[1], [0], [0], [1], [0, 0, 1, 1], [], []>} : vector<2x32xf32>, vector<32x128xf32>, vector<2x128xf32> -> vector<2x128xf32>
    %c0_22 = arith.constant 0 : index
    %c0_23 = arith.constant 0 : index
    %23 = vector.load %arg11[%c0_22, %c0_23] : memref<1x128xf32, #tpu.memory_space<vmem>>, vector<1x128xf32>
    %24 = vector.broadcast %23 : vector<1x128xf32> to vector<2x128xf32>
    %25 = arith.addf %22, %24 : vector<2x128xf32>
    %26 = vector.shape_cast %13 : vector<2x128xf32> to vector<2x1x128xf32>
    %27 = vector.shape_cast %0 : vector<8x128xf32> to vector<1x8x128xf32>
    %28 = vector.broadcast %26 : vector<2x1x128xf32> to vector<2x8x128xf32>
    %29 = vector.broadcast %27 : vector<1x8x128xf32> to vector<2x8x128xf32>
    %30 = arith.mulf %28, %29 : vector<2x8x128xf32>
    %31 = vector.shape_cast %25 : vector<2x128xf32> to vector<2x1x128xf32>
    %32 = vector.broadcast %31 : vector<2x1x128xf32> to vector<2x8x128xf32>
    %33 = arith.addf %30, %32 : vector<2x8x128xf32>
    %34 = vector.shape_cast %33 : vector<2x8x128xf32> to vector<16x128xf32>
    %c0_24 = arith.constant 0 : index
    %35 = memref.load %arg3[%c0_24] : memref<5xf32, #tpu.memory_space<smem>>
    %c0_25 = arith.constant 0 : index
    %c0_26 = arith.constant 0 : index
    %c0_27 = arith.constant 0 : index
    %c0_28 = arith.constant 0 : index
    %36 = vector.load %arg2[%c0_25, %c0_26, %c0_27, %c0_28] : memref<4x2x16x128xf32, #tpu.memory_space<vmem>>, vector<1x2x16x128xf32>
    %37 = vector.shape_cast %36 : vector<1x2x16x128xf32> to vector<2x16x128xf32>
    %38 = vector.broadcast %35 : f32 to vector<2x16x128xf32>
    %39 = arith.mulf %38, %37 : vector<2x16x128xf32>
    %c1 = arith.constant 1 : index
    %40 = memref.load %arg3[%c1] : memref<5xf32, #tpu.memory_space<smem>>
    %c1_29 = arith.constant 1 : index
    %c0_30 = arith.constant 0 : index
    %c0_31 = arith.constant 0 : index
    %c0_32 = arith.constant 0 : index
    %41 = vector.load %arg2[%c1_29, %c0_30, %c0_31, %c0_32] : memref<4x2x16x128xf32, #tpu.memory_space<vmem>>, vector<1x2x16x128xf32>
    %42 = vector.shape_cast %41 : vector<1x2x16x128xf32> to vector<2x16x128xf32>
    %43 = vector.broadcast %40 : f32 to vector<2x16x128xf32>
    %44 = arith.mulf %43, %42 : vector<2x16x128xf32>
    %45 = arith.addf %39, %44 : vector<2x16x128xf32>
    %c2 = arith.constant 2 : index
    %46 = memref.load %arg3[%c2] : memref<5xf32, #tpu.memory_space<smem>>
    %c2_33 = arith.constant 2 : index
    %c0_34 = arith.constant 0 : index
    %c0_35 = arith.constant 0 : index
    %c0_36 = arith.constant 0 : index
    %47 = vector.load %arg2[%c2_33, %c0_34, %c0_35, %c0_36] : memref<4x2x16x128xf32, #tpu.memory_space<vmem>>, vector<1x2x16x128xf32>
    %48 = vector.shape_cast %47 : vector<1x2x16x128xf32> to vector<2x16x128xf32>
    %49 = vector.broadcast %46 : f32 to vector<2x16x128xf32>
    %50 = arith.mulf %49, %48 : vector<2x16x128xf32>
    %51 = arith.addf %45, %50 : vector<2x16x128xf32>
    %c3 = arith.constant 3 : index
    %52 = memref.load %arg3[%c3] : memref<5xf32, #tpu.memory_space<smem>>
    %c3_37 = arith.constant 3 : index
    %c0_38 = arith.constant 0 : index
    %c0_39 = arith.constant 0 : index
    %c0_40 = arith.constant 0 : index
    %53 = vector.load %arg2[%c3_37, %c0_38, %c0_39, %c0_40] : memref<4x2x16x128xf32, #tpu.memory_space<vmem>>, vector<1x2x16x128xf32>
    %54 = vector.shape_cast %53 : vector<1x2x16x128xf32> to vector<2x16x128xf32>
    %55 = vector.broadcast %52 : f32 to vector<2x16x128xf32>
    %56 = arith.mulf %55, %54 : vector<2x16x128xf32>
    %57 = arith.addf %51, %56 : vector<2x16x128xf32>
    %c4 = arith.constant 4 : index
    %58 = memref.load %arg3[%c4] : memref<5xf32, #tpu.memory_space<smem>>
    %59 = vector.broadcast %58 : f32 to vector<2x16x128xf32>
    %60 = arith.addf %57, %59 : vector<2x16x128xf32>
    %c0_41 = arith.constant 0 : index
    %c0_42 = arith.constant 0 : index
    %61 = vector.load %arg12[%c0_41, %c0_42] : memref<128x128xf32, #tpu.memory_space<vmem>>, vector<128x128xf32>
    %cst_43 = arith.constant dense<0.000000e+00> : vector<16x128xf32>
    %62 = tpu.matmul %34, %61, %cst_43 {dimension_numbers = #tpu.dot_dimension_numbers<[1], [0], [0], [1], [0, 0, 1, 1], [], []>} : vector<16x128xf32>, vector<128x128xf32>, vector<16x128xf32> -> vector<16x128xf32>
    %c0_44 = arith.constant 0 : index
    %c0_45 = arith.constant 0 : index
    %63 = vector.load %arg13[%c0_44, %c0_45] : memref<1x128xf32, #tpu.memory_space<vmem>>, vector<1x128xf32>
    %64 = vector.broadcast %63 : vector<1x128xf32> to vector<16x128xf32>
    %65 = arith.addf %62, %64 : vector<16x128xf32>
    %66 = vector.shape_cast %65 : vector<16x128xf32> to vector<2x8x128xf32>
    %67 = vector.shape_cast %60 : vector<2x16x128xf32> to vector<32x128xf32>
    %c0_46 = arith.constant 0 : index
    %c0_47 = arith.constant 0 : index
    %68 = vector.load %arg14[%c0_46, %c0_47] : memref<128x128xf32, #tpu.memory_space<vmem>>, vector<128x128xf32>
    %cst_48 = arith.constant dense<0.000000e+00> : vector<32x128xf32>
    %69 = tpu.matmul %67, %68, %cst_48 {dimension_numbers = #tpu.dot_dimension_numbers<[1], [0], [0], [1], [0, 0, 1, 1], [], []>} : vector<32x128xf32>, vector<128x128xf32>, vector<32x128xf32> -> vector<32x128xf32>
    %c0_49 = arith.constant 0 : index
    %c0_50 = arith.constant 0 : index
    %70 = vector.load %arg15[%c0_49, %c0_50] : memref<1x128xf32, #tpu.memory_space<vmem>>, vector<1x128xf32>
    %71 = vector.broadcast %70 : vector<1x128xf32> to vector<32x128xf32>
    %72 = arith.addf %69, %71 : vector<32x128xf32>
    %73 = vector.shape_cast %72 : vector<32x128xf32> to vector<2x16x128xf32>
    %c0_51 = arith.constant 0 : index
    %c0_52 = arith.constant 0 : index
    %74 = vector.load %arg16[%c0_51, %c0_52] : memref<128x128xf32, #tpu.memory_space<vmem>>, vector<128x128xf32>
    %cst_53 = arith.constant dense<0.000000e+00> : vector<32x128xf32>
    %75 = tpu.matmul %67, %74, %cst_53 {dimension_numbers = #tpu.dot_dimension_numbers<[1], [0], [0], [1], [0, 0, 1, 1], [], []>} : vector<32x128xf32>, vector<128x128xf32>, vector<32x128xf32> -> vector<32x128xf32>
    %c0_54 = arith.constant 0 : index
    %c0_55 = arith.constant 0 : index
    %76 = vector.load %arg17[%c0_54, %c0_55] : memref<1x128xf32, #tpu.memory_space<vmem>>, vector<1x128xf32>
    %77 = vector.broadcast %76 : vector<1x128xf32> to vector<32x128xf32>
    %78 = arith.addf %75, %77 : vector<32x128xf32>
    %79 = vector.shape_cast %78 : vector<32x128xf32> to vector<2x16x128xf32>
    %80 = vector.extract_strided_slice %66 {offsets = [0, 0, 0], sizes = [2, 8, 16], strides = [1, 1, 1]} : vector<2x8x128xf32> to vector<2x8x16xf32>
    %81 = vector.extract_strided_slice %73 {offsets = [0, 0, 0], sizes = [2, 16, 16], strides = [1, 1, 1]} : vector<2x16x128xf32> to vector<2x16x16xf32>
    %82 = vector.extract_strided_slice %79 {offsets = [0, 0, 0], sizes = [2, 16, 16], strides = [1, 1, 1]} : vector<2x16x128xf32> to vector<2x16x16xf32>
    "tpu.trace_start"() <{level = 10 : i32, message = "bld,bpd->blp"}> : () -> ()
    %cst_56 = arith.constant dense<0.000000e+00> : vector<2x8x16xf32>
    %83 = tpu.matmul %80, %81, %cst_56 {dimension_numbers = #tpu.dot_dimension_numbers<[2], [2], [1], [1], [0, 0, 0, 1, 1, 1], [0], [0]>} : vector<2x8x16xf32>, vector<2x16x16xf32>, vector<2x8x16xf32> -> vector<2x8x16xf32>
    "tpu.trace_stop"() : () -> ()
    %cst_57 = arith.constant 2.500000e-01 : f32
    %84 = vector.broadcast %cst_57 : f32 to vector<2x8x16xf32>
    %85 = arith.mulf %83, %84 : vector<2x8x16xf32>
    %cst_58 = arith.constant dense<0xFF800000> : vector<2x8xf32>
    %86 = vector.multi_reduction <maximumf>, %85, %cst_58 [2] : vector<2x8x16xf32> to vector<2x8xf32>
    %87 = vector.shape_cast %86 : vector<2x8xf32> to vector<2x8x1xf32>
    %88 = vector.broadcast %87 : vector<2x8x1xf32> to vector<2x8x16xf32>
    %89 = arith.subf %85, %88 : vector<2x8x16xf32>
    %90 = math.exp %89 : vector<2x8x16xf32>
    %cst_59 = arith.constant dense<0.000000e+00> : vector<2x8xf32>
    %91 = vector.multi_reduction <add>, %90, %cst_59 [2] : vector<2x8x16xf32> to vector<2x8xf32>
    %92 = vector.shape_cast %91 : vector<2x8xf32> to vector<2x8x1xf32>
    %93 = vector.broadcast %92 : vector<2x8x1xf32> to vector<2x8x16xf32>
    %94 = arith.divf %90, %93 : vector<2x8x16xf32>
    "tpu.trace_start"() <{level = 10 : i32, message = "blp,bpd->bld"}> : () -> ()
    %cst_60 = arith.constant dense<0.000000e+00> : vector<2x8x16xf32>
    %95 = tpu.matmul %94, %82, %cst_60 {dimension_numbers = #tpu.dot_dimension_numbers<[2], [1], [1], [2], [0, 0, 0, 1, 1, 2], [0], [0]>} : vector<2x8x16xf32>, vector<2x16x16xf32>, vector<2x8x16xf32> -> vector<2x8x16xf32>
    "tpu.trace_stop"() : () -> ()
    %96 = vector.extract_strided_slice %66 {offsets = [0, 0, 16], sizes = [2, 8, 16], strides = [1, 1, 1]} : vector<2x8x128xf32> to vector<2x8x16xf32>
    %97 = vector.extract_strided_slice %73 {offsets = [0, 0, 16], sizes = [2, 16, 16], strides = [1, 1, 1]} : vector<2x16x128xf32> to vector<2x16x16xf32>
    %98 = vector.extract_strided_slice %79 {offsets = [0, 0, 16], sizes = [2, 16, 16], strides = [1, 1, 1]} : vector<2x16x128xf32> to vector<2x16x16xf32>
    "tpu.trace_start"() <{level = 10 : i32, message = "bld,bpd->blp"}> : () -> ()
    %cst_61 = arith.constant dense<0.000000e+00> : vector<2x8x16xf32>
    %99 = tpu.matmul %96, %97, %cst_61 {dimension_numbers = #tpu.dot_dimension_numbers<[2], [2], [1], [1], [0, 0, 0, 1, 1, 1], [0], [0]>} : vector<2x8x16xf32>, vector<2x16x16xf32>, vector<2x8x16xf32> -> vector<2x8x16xf32>
    "tpu.trace_stop"() : () -> ()
    %cst_62 = arith.constant 2.500000e-01 : f32
    %100 = vector.broadcast %cst_62 : f32 to vector<2x8x16xf32>
    %101 = arith.mulf %99, %100 : vector<2x8x16xf32>
    %cst_63 = arith.constant dense<0xFF800000> : vector<2x8xf32>
    %102 = vector.multi_reduction <maximumf>, %101, %cst_63 [2] : vector<2x8x16xf32> to vector<2x8xf32>
    %103 = vector.shape_cast %102 : vector<2x8xf32> to vector<2x8x1xf32>
    %104 = vector.broadcast %103 : vector<2x8x1xf32> to vector<2x8x16xf32>
    %105 = arith.subf %101, %104 : vector<2x8x16xf32>
    %106 = math.exp %105 : vector<2x8x16xf32>
    %cst_64 = arith.constant dense<0.000000e+00> : vector<2x8xf32>
    %107 = vector.multi_reduction <add>, %106, %cst_64 [2] : vector<2x8x16xf32> to vector<2x8xf32>
    %108 = vector.shape_cast %107 : vector<2x8xf32> to vector<2x8x1xf32>
    %109 = vector.broadcast %108 : vector<2x8x1xf32> to vector<2x8x16xf32>
    %110 = arith.divf %106, %109 : vector<2x8x16xf32>
    "tpu.trace_start"() <{level = 10 : i32, message = "blp,bpd->bld"}> : () -> ()
    %cst_65 = arith.constant dense<0.000000e+00> : vector<2x8x16xf32>
    %111 = tpu.matmul %110, %98, %cst_65 {dimension_numbers = #tpu.dot_dimension_numbers<[2], [1], [1], [2], [0, 0, 0, 1, 1, 2], [0], [0]>} : vector<2x8x16xf32>, vector<2x16x16xf32>, vector<2x8x16xf32> -> vector<2x8x16xf32>
    "tpu.trace_stop"() : () -> ()
    %112 = vector.extract_strided_slice %66 {offsets = [0, 0, 32], sizes = [2, 8, 16], strides = [1, 1, 1]} : vector<2x8x128xf32> to vector<2x8x16xf32>
    %113 = vector.extract_strided_slice %73 {offsets = [0, 0, 32], sizes = [2, 16, 16], strides = [1, 1, 1]} : vector<2x16x128xf32> to vector<2x16x16xf32>
    %114 = vector.extract_strided_slice %79 {offsets = [0, 0, 32], sizes = [2, 16, 16], strides = [1, 1, 1]} : vector<2x16x128xf32> to vector<2x16x16xf32>
    "tpu.trace_start"() <{level = 10 : i32, message = "bld,bpd->blp"}> : () -> ()
    %cst_66 = arith.constant dense<0.000000e+00> : vector<2x8x16xf32>
    %115 = tpu.matmul %112, %113, %cst_66 {dimension_numbers = #tpu.dot_dimension_numbers<[2], [2], [1], [1], [0, 0, 0, 1, 1, 1], [0], [0]>} : vector<2x8x16xf32>, vector<2x16x16xf32>, vector<2x8x16xf32> -> vector<2x8x16xf32>
    "tpu.trace_stop"() : () -> ()
    %cst_67 = arith.constant 2.500000e-01 : f32
    %116 = vector.broadcast %cst_67 : f32 to vector<2x8x16xf32>
    %117 = arith.mulf %115, %116 : vector<2x8x16xf32>
    %cst_68 = arith.constant dense<0xFF800000> : vector<2x8xf32>
    %118 = vector.multi_reduction <maximumf>, %117, %cst_68 [2] : vector<2x8x16xf32> to vector<2x8xf32>
    %119 = vector.shape_cast %118 : vector<2x8xf32> to vector<2x8x1xf32>
    %120 = vector.broadcast %119 : vector<2x8x1xf32> to vector<2x8x16xf32>
    %121 = arith.subf %117, %120 : vector<2x8x16xf32>
    %122 = math.exp %121 : vector<2x8x16xf32>
    %cst_69 = arith.constant dense<0.000000e+00> : vector<2x8xf32>
    %123 = vector.multi_reduction <add>, %122, %cst_69 [2] : vector<2x8x16xf32> to vector<2x8xf32>
    %124 = vector.shape_cast %123 : vector<2x8xf32> to vector<2x8x1xf32>
    %125 = vector.broadcast %124 : vector<2x8x1xf32> to vector<2x8x16xf32>
    %126 = arith.divf %122, %125 : vector<2x8x16xf32>
    "tpu.trace_start"() <{level = 10 : i32, message = "blp,bpd->bld"}> : () -> ()
    %cst_70 = arith.constant dense<0.000000e+00> : vector<2x8x16xf32>
    %127 = tpu.matmul %126, %114, %cst_70 {dimension_numbers = #tpu.dot_dimension_numbers<[2], [1], [1], [2], [0, 0, 0, 1, 1, 2], [0], [0]>} : vector<2x8x16xf32>, vector<2x16x16xf32>, vector<2x8x16xf32> -> vector<2x8x16xf32>
    "tpu.trace_stop"() : () -> ()
    %128 = vector.extract_strided_slice %66 {offsets = [0, 0, 48], sizes = [2, 8, 16], strides = [1, 1, 1]} : vector<2x8x128xf32> to vector<2x8x16xf32>
    %129 = vector.extract_strided_slice %73 {offsets = [0, 0, 48], sizes = [2, 16, 16], strides = [1, 1, 1]} : vector<2x16x128xf32> to vector<2x16x16xf32>
    %130 = vector.extract_strided_slice %79 {offsets = [0, 0, 48], sizes = [2, 16, 16], strides = [1, 1, 1]} : vector<2x16x128xf32> to vector<2x16x16xf32>
    "tpu.trace_start"() <{level = 10 : i32, message = "bld,bpd->blp"}> : () -> ()
    %cst_71 = arith.constant dense<0.000000e+00> : vector<2x8x16xf32>
    %131 = tpu.matmul %128, %129, %cst_71 {dimension_numbers = #tpu.dot_dimension_numbers<[2], [2], [1], [1], [0, 0, 0, 1, 1, 1], [0], [0]>} : vector<2x8x16xf32>, vector<2x16x16xf32>, vector<2x8x16xf32> -> vector<2x8x16xf32>
    "tpu.trace_stop"() : () -> ()
    %cst_72 = arith.constant 2.500000e-01 : f32
    %132 = vector.broadcast %cst_72 : f32 to vector<2x8x16xf32>
    %133 = arith.mulf %131, %132 : vector<2x8x16xf32>
    %cst_73 = arith.constant dense<0xFF800000> : vector<2x8xf32>
    %134 = vector.multi_reduction <maximumf>, %133, %cst_73 [2] : vector<2x8x16xf32> to vector<2x8xf32>
    %135 = vector.shape_cast %134 : vector<2x8xf32> to vector<2x8x1xf32>
    %136 = vector.broadcast %135 : vector<2x8x1xf32> to vector<2x8x16xf32>
    %137 = arith.subf %133, %136 : vector<2x8x16xf32>
    %138 = math.exp %137 : vector<2x8x16xf32>
    %cst_74 = arith.constant dense<0.000000e+00> : vector<2x8xf32>
    %139 = vector.multi_reduction <add>, %138, %cst_74 [2] : vector<2x8x16xf32> to vector<2x8xf32>
    %140 = vector.shape_cast %139 : vector<2x8xf32> to vector<2x8x1xf32>
    %141 = vector.broadcast %140 : vector<2x8x1xf32> to vector<2x8x16xf32>
    %142 = arith.divf %138, %141 : vector<2x8x16xf32>
    "tpu.trace_start"() <{level = 10 : i32, message = "blp,bpd->bld"}> : () -> ()
    %cst_75 = arith.constant dense<0.000000e+00> : vector<2x8x16xf32>
    %143 = tpu.matmul %142, %130, %cst_75 {dimension_numbers = #tpu.dot_dimension_numbers<[2], [1], [1], [2], [0, 0, 0, 1, 1, 2], [0], [0]>} : vector<2x8x16xf32>, vector<2x16x16xf32>, vector<2x8x16xf32> -> vector<2x8x16xf32>
    "tpu.trace_stop"() : () -> ()
    %144 = vector.extract_strided_slice %66 {offsets = [0, 0, 64], sizes = [2, 8, 16], strides = [1, 1, 1]} : vector<2x8x128xf32> to vector<2x8x16xf32>
    %145 = vector.extract_strided_slice %73 {offsets = [0, 0, 64], sizes = [2, 16, 16], strides = [1, 1, 1]} : vector<2x16x128xf32> to vector<2x16x16xf32>
    %146 = vector.extract_strided_slice %79 {offsets = [0, 0, 64], sizes = [2, 16, 16], strides = [1, 1, 1]} : vector<2x16x128xf32> to vector<2x16x16xf32>
    "tpu.trace_start"() <{level = 10 : i32, message = "bld,bpd->blp"}> : () -> ()
    %cst_76 = arith.constant dense<0.000000e+00> : vector<2x8x16xf32>
    %147 = tpu.matmul %144, %145, %cst_76 {dimension_numbers = #tpu.dot_dimension_numbers<[2], [2], [1], [1], [0, 0, 0, 1, 1, 1], [0], [0]>} : vector<2x8x16xf32>, vector<2x16x16xf32>, vector<2x8x16xf32> -> vector<2x8x16xf32>
    "tpu.trace_stop"() : () -> ()
    %cst_77 = arith.constant 2.500000e-01 : f32
    %148 = vector.broadcast %cst_77 : f32 to vector<2x8x16xf32>
    %149 = arith.mulf %147, %148 : vector<2x8x16xf32>
    %cst_78 = arith.constant dense<0xFF800000> : vector<2x8xf32>
    %150 = vector.multi_reduction <maximumf>, %149, %cst_78 [2] : vector<2x8x16xf32> to vector<2x8xf32>
    %151 = vector.shape_cast %150 : vector<2x8xf32> to vector<2x8x1xf32>
    %152 = vector.broadcast %151 : vector<2x8x1xf32> to vector<2x8x16xf32>
    %153 = arith.subf %149, %152 : vector<2x8x16xf32>
    %154 = math.exp %153 : vector<2x8x16xf32>
    %cst_79 = arith.constant dense<0.000000e+00> : vector<2x8xf32>
    %155 = vector.multi_reduction <add>, %154, %cst_79 [2] : vector<2x8x16xf32> to vector<2x8xf32>
    %156 = vector.shape_cast %155 : vector<2x8xf32> to vector<2x8x1xf32>
    %157 = vector.broadcast %156 : vector<2x8x1xf32> to vector<2x8x16xf32>
    %158 = arith.divf %154, %157 : vector<2x8x16xf32>
    "tpu.trace_start"() <{level = 10 : i32, message = "blp,bpd->bld"}> : () -> ()
    %cst_80 = arith.constant dense<0.000000e+00> : vector<2x8x16xf32>
    %159 = tpu.matmul %158, %146, %cst_80 {dimension_numbers = #tpu.dot_dimension_numbers<[2], [1], [1], [2], [0, 0, 0, 1, 1, 2], [0], [0]>} : vector<2x8x16xf32>, vector<2x16x16xf32>, vector<2x8x16xf32> -> vector<2x8x16xf32>
    "tpu.trace_stop"() : () -> ()
    %160 = vector.extract_strided_slice %66 {offsets = [0, 0, 80], sizes = [2, 8, 16], strides = [1, 1, 1]} : vector<2x8x128xf32> to vector<2x8x16xf32>
    %161 = vector.extract_strided_slice %73 {offsets = [0, 0, 80], sizes = [2, 16, 16], strides = [1, 1, 1]} : vector<2x16x128xf32> to vector<2x16x16xf32>
    %162 = vector.extract_strided_slice %79 {offsets = [0, 0, 80], sizes = [2, 16, 16], strides = [1, 1, 1]} : vector<2x16x128xf32> to vector<2x16x16xf32>
    "tpu.trace_start"() <{level = 10 : i32, message = "bld,bpd->blp"}> : () -> ()
    %cst_81 = arith.constant dense<0.000000e+00> : vector<2x8x16xf32>
    %163 = tpu.matmul %160, %161, %cst_81 {dimension_numbers = #tpu.dot_dimension_numbers<[2], [2], [1], [1], [0, 0, 0, 1, 1, 1], [0], [0]>} : vector<2x8x16xf32>, vector<2x16x16xf32>, vector<2x8x16xf32> -> vector<2x8x16xf32>
    "tpu.trace_stop"() : () -> ()
    %cst_82 = arith.constant 2.500000e-01 : f32
    %164 = vector.broadcast %cst_82 : f32 to vector<2x8x16xf32>
    %165 = arith.mulf %163, %164 : vector<2x8x16xf32>
    %cst_83 = arith.constant dense<0xFF800000> : vector<2x8xf32>
    %166 = vector.multi_reduction <maximumf>, %165, %cst_83 [2] : vector<2x8x16xf32> to vector<2x8xf32>
    %167 = vector.shape_cast %166 : vector<2x8xf32> to vector<2x8x1xf32>
    %168 = vector.broadcast %167 : vector<2x8x1xf32> to vector<2x8x16xf32>
    %169 = arith.subf %165, %168 : vector<2x8x16xf32>
    %170 = math.exp %169 : vector<2x8x16xf32>
    %cst_84 = arith.constant dense<0.000000e+00> : vector<2x8xf32>
    %171 = vector.multi_reduction <add>, %170, %cst_84 [2] : vector<2x8x16xf32> to vector<2x8xf32>
    %172 = vector.shape_cast %171 : vector<2x8xf32> to vector<2x8x1xf32>
    %173 = vector.broadcast %172 : vector<2x8x1xf32> to vector<2x8x16xf32>
    %174 = arith.divf %170, %173 : vector<2x8x16xf32>
    "tpu.trace_start"() <{level = 10 : i32, message = "blp,bpd->bld"}> : () -> ()
    %cst_85 = arith.constant dense<0.000000e+00> : vector<2x8x16xf32>
    %175 = tpu.matmul %174, %162, %cst_85 {dimension_numbers = #tpu.dot_dimension_numbers<[2], [1], [1], [2], [0, 0, 0, 1, 1, 2], [0], [0]>} : vector<2x8x16xf32>, vector<2x16x16xf32>, vector<2x8x16xf32> -> vector<2x8x16xf32>
    "tpu.trace_stop"() : () -> ()
    %176 = vector.extract_strided_slice %66 {offsets = [0, 0, 96], sizes = [2, 8, 16], strides = [1, 1, 1]} : vector<2x8x128xf32> to vector<2x8x16xf32>
    %177 = vector.extract_strided_slice %73 {offsets = [0, 0, 96], sizes = [2, 16, 16], strides = [1, 1, 1]} : vector<2x16x128xf32> to vector<2x16x16xf32>
    %178 = vector.extract_strided_slice %79 {offsets = [0, 0, 96], sizes = [2, 16, 16], strides = [1, 1, 1]} : vector<2x16x128xf32> to vector<2x16x16xf32>
    "tpu.trace_start"() <{level = 10 : i32, message = "bld,bpd->blp"}> : () -> ()
    %cst_86 = arith.constant dense<0.000000e+00> : vector<2x8x16xf32>
    %179 = tpu.matmul %176, %177, %cst_86 {dimension_numbers = #tpu.dot_dimension_numbers<[2], [2], [1], [1], [0, 0, 0, 1, 1, 1], [0], [0]>} : vector<2x8x16xf32>, vector<2x16x16xf32>, vector<2x8x16xf32> -> vector<2x8x16xf32>
    "tpu.trace_stop"() : () -> ()
    %cst_87 = arith.constant 2.500000e-01 : f32
    %180 = vector.broadcast %cst_87 : f32 to vector<2x8x16xf32>
    %181 = arith.mulf %179, %180 : vector<2x8x16xf32>
    %cst_88 = arith.constant dense<0xFF800000> : vector<2x8xf32>
    %182 = vector.multi_reduction <maximumf>, %181, %cst_88 [2] : vector<2x8x16xf32> to vector<2x8xf32>
    %183 = vector.shape_cast %182 : vector<2x8xf32> to vector<2x8x1xf32>
    %184 = vector.broadcast %183 : vector<2x8x1xf32> to vector<2x8x16xf32>
    %185 = arith.subf %181, %184 : vector<2x8x16xf32>
    %186 = math.exp %185 : vector<2x8x16xf32>
    %cst_89 = arith.constant dense<0.000000e+00> : vector<2x8xf32>
    %187 = vector.multi_reduction <add>, %186, %cst_89 [2] : vector<2x8x16xf32> to vector<2x8xf32>
    %188 = vector.shape_cast %187 : vector<2x8xf32> to vector<2x8x1xf32>
    %189 = vector.broadcast %188 : vector<2x8x1xf32> to vector<2x8x16xf32>
    %190 = arith.divf %186, %189 : vector<2x8x16xf32>
    "tpu.trace_start"() <{level = 10 : i32, message = "blp,bpd->bld"}> : () -> ()
    %cst_90 = arith.constant dense<0.000000e+00> : vector<2x8x16xf32>
    %191 = tpu.matmul %190, %178, %cst_90 {dimension_numbers = #tpu.dot_dimension_numbers<[2], [1], [1], [2], [0, 0, 0, 1, 1, 2], [0], [0]>} : vector<2x8x16xf32>, vector<2x16x16xf32>, vector<2x8x16xf32> -> vector<2x8x16xf32>
    "tpu.trace_stop"() : () -> ()
    %192 = vector.extract_strided_slice %66 {offsets = [0, 0, 112], sizes = [2, 8, 16], strides = [1, 1, 1]} : vector<2x8x128xf32> to vector<2x8x16xf32>
    %193 = vector.extract_strided_slice %73 {offsets = [0, 0, 112], sizes = [2, 16, 16], strides = [1, 1, 1]} : vector<2x16x128xf32> to vector<2x16x16xf32>
    %194 = vector.extract_strided_slice %79 {offsets = [0, 0, 112], sizes = [2, 16, 16], strides = [1, 1, 1]} : vector<2x16x128xf32> to vector<2x16x16xf32>
    "tpu.trace_start"() <{level = 10 : i32, message = "bld,bpd->blp"}> : () -> ()
    %cst_91 = arith.constant dense<0.000000e+00> : vector<2x8x16xf32>
    %195 = tpu.matmul %192, %193, %cst_91 {dimension_numbers = #tpu.dot_dimension_numbers<[2], [2], [1], [1], [0, 0, 0, 1, 1, 1], [0], [0]>} : vector<2x8x16xf32>, vector<2x16x16xf32>, vector<2x8x16xf32> -> vector<2x8x16xf32>
    "tpu.trace_stop"() : () -> ()
    %cst_92 = arith.constant 2.500000e-01 : f32
    %196 = vector.broadcast %cst_92 : f32 to vector<2x8x16xf32>
    %197 = arith.mulf %195, %196 : vector<2x8x16xf32>
    %cst_93 = arith.constant dense<0xFF800000> : vector<2x8xf32>
    %198 = vector.multi_reduction <maximumf>, %197, %cst_93 [2] : vector<2x8x16xf32> to vector<2x8xf32>
    %199 = vector.shape_cast %198 : vector<2x8xf32> to vector<2x8x1xf32>
    %200 = vector.broadcast %199 : vector<2x8x1xf32> to vector<2x8x16xf32>
    %201 = arith.subf %197, %200 : vector<2x8x16xf32>
    %202 = math.exp %201 : vector<2x8x16xf32>
    %cst_94 = arith.constant dense<0.000000e+00> : vector<2x8xf32>
    %203 = vector.multi_reduction <add>, %202, %cst_94 [2] : vector<2x8x16xf32> to vector<2x8xf32>
    %204 = vector.shape_cast %203 : vector<2x8xf32> to vector<2x8x1xf32>
    %205 = vector.broadcast %204 : vector<2x8x1xf32> to vector<2x8x16xf32>
    %206 = arith.divf %202, %205 : vector<2x8x16xf32>
    "tpu.trace_start"() <{level = 10 : i32, message = "blp,bpd->bld"}> : () -> ()
    %cst_95 = arith.constant dense<0.000000e+00> : vector<2x8x16xf32>
    %207 = tpu.matmul %206, %194, %cst_95 {dimension_numbers = #tpu.dot_dimension_numbers<[2], [1], [1], [2], [0, 0, 0, 1, 1, 2], [0], [0]>} : vector<2x8x16xf32>, vector<2x16x16xf32>, vector<2x8x16xf32> -> vector<2x8x16xf32>
    "tpu.trace_stop"() : () -> ()
    %208 = tpu.concatenate %95, %111, %127, %143, %159, %175, %191, %207 in 2 : vector<2x8x16xf32>, vector<2x8x16xf32>, vector<2x8x16xf32>, vector<2x8x16xf32>, vector<2x8x16xf32>, vector<2x8x16xf32>, vector<2x8x16xf32>, vector<2x8x16xf32> -> vector<2x8x128xf32>
    %209 = vector.shape_cast %208 : vector<2x8x128xf32> to vector<16x128xf32>
    %c0_96 = arith.constant 0 : index
    %c0_97 = arith.constant 0 : index
    %210 = vector.load %arg18[%c0_96, %c0_97] : memref<128x128xf32, #tpu.memory_space<vmem>>, vector<128x128xf32>
    %cst_98 = arith.constant dense<0.000000e+00> : vector<16x128xf32>
    %211 = tpu.matmul %209, %210, %cst_98 {dimension_numbers = #tpu.dot_dimension_numbers<[1], [0], [0], [1], [0, 0, 1, 1], [], []>} : vector<16x128xf32>, vector<128x128xf32>, vector<16x128xf32> -> vector<16x128xf32>
    %c0_99 = arith.constant 0 : index
    %c0_100 = arith.constant 0 : index
    %212 = vector.load %arg19[%c0_99, %c0_100] : memref<1x128xf32, #tpu.memory_space<vmem>>, vector<1x128xf32>
    %213 = vector.broadcast %212 : vector<1x128xf32> to vector<16x128xf32>
    %214 = arith.addf %211, %213 : vector<16x128xf32>
    %215 = arith.addf %214, %34 : vector<16x128xf32>
    %cst_101 = arith.constant dense<0.000000e+00> : vector<16xf32>
    %216 = vector.multi_reduction <add>, %215, %cst_101 [1] : vector<16x128xf32> to vector<16xf32>
    %217 = vector.shape_cast %216 : vector<16xf32> to vector<16x1xf32>
    %cst_102 = arith.constant 1.280000e+02 : f32
    %218 = vector.broadcast %cst_102 : f32 to vector<16x1xf32>
    %219 = arith.divf %217, %218 : vector<16x1xf32>
    %220 = vector.broadcast %219 : vector<16x1xf32> to vector<16x128xf32>
    %221 = arith.subf %215, %220 : vector<16x128xf32>
    %222 = arith.mulf %221, %221 : vector<16x128xf32>
    %cst_103 = arith.constant dense<0.000000e+00> : vector<16xf32>
    %223 = vector.multi_reduction <add>, %222, %cst_103 [1] : vector<16x128xf32> to vector<16xf32>
    %224 = vector.shape_cast %223 : vector<16xf32> to vector<16x1xf32>
    %cst_104 = arith.constant 1.280000e+02 : f32
    %225 = vector.broadcast %cst_104 : f32 to vector<16x1xf32>
    %226 = arith.divf %224, %225 : vector<16x1xf32>
    %cst_105 = arith.constant 9.99999974E-6 : f32
    %227 = vector.broadcast %cst_105 : f32 to vector<16x1xf32>
    %228 = arith.addf %226, %227 : vector<16x1xf32>
    %229 = math.rsqrt %228 : vector<16x1xf32>
    %230 = vector.broadcast %229 : vector<16x1xf32> to vector<16x128xf32>
    %231 = arith.mulf %221, %230 : vector<16x128xf32>
    %c0_106 = arith.constant 0 : index
    %c0_107 = arith.constant 0 : index
    %232 = vector.load %arg20[%c0_106, %c0_107] : memref<1x128xf32, #tpu.memory_space<vmem>>, vector<1x128xf32>
    %233 = vector.broadcast %232 : vector<1x128xf32> to vector<16x128xf32>
    %234 = arith.mulf %231, %233 : vector<16x128xf32>
    %c0_108 = arith.constant 0 : index
    %c0_109 = arith.constant 0 : index
    %235 = vector.load %arg21[%c0_108, %c0_109] : memref<1x128xf32, #tpu.memory_space<vmem>>, vector<1x128xf32>
    %236 = vector.broadcast %235 : vector<1x128xf32> to vector<16x128xf32>
    %237 = arith.addf %234, %236 : vector<16x128xf32>
    %c0_110 = arith.constant 0 : index
    %c0_111 = arith.constant 0 : index
    %238 = vector.load %arg22[%c0_110, %c0_111] : memref<128x32xf32, #tpu.memory_space<vmem>>, vector<128x32xf32>
    %cst_112 = arith.constant dense<0.000000e+00> : vector<16x32xf32>
    %239 = tpu.matmul %237, %238, %cst_112 {dimension_numbers = #tpu.dot_dimension_numbers<[1], [0], [0], [1], [0, 0, 1, 1], [], []>} : vector<16x128xf32>, vector<128x32xf32>, vector<16x32xf32> -> vector<16x32xf32>
    %c0_113 = arith.constant 0 : index
    %c0_114 = arith.constant 0 : index
    %240 = vector.load %arg23[%c0_113, %c0_114] : memref<1x32xf32, #tpu.memory_space<vmem>>, vector<1x32xf32>
    %241 = vector.broadcast %240 : vector<1x32xf32> to vector<16x32xf32>
    %242 = arith.addf %239, %241 : vector<16x32xf32>
    %cst_115 = arith.constant 0.000000e+00 : f32
    %243 = vector.broadcast %cst_115 : f32 to vector<16x32xf32>
    %244 = arith.maximumf %242, %243 : vector<16x32xf32>
    %c0_116 = arith.constant 0 : index
    %c0_117 = arith.constant 0 : index
    %245 = vector.load %arg24[%c0_116, %c0_117] : memref<32x128xf32, #tpu.memory_space<vmem>>, vector<32x128xf32>
    %cst_118 = arith.constant dense<0.000000e+00> : vector<16x128xf32>
    %246 = tpu.matmul %244, %245, %cst_118 {dimension_numbers = #tpu.dot_dimension_numbers<[1], [0], [0], [1], [0, 0, 1, 1], [], []>} : vector<16x32xf32>, vector<32x128xf32>, vector<16x128xf32> -> vector<16x128xf32>
    %c0_119 = arith.constant 0 : index
    %c0_120 = arith.constant 0 : index
    %247 = vector.load %arg25[%c0_119, %c0_120] : memref<1x128xf32, #tpu.memory_space<vmem>>, vector<1x128xf32>
    %248 = vector.broadcast %247 : vector<1x128xf32> to vector<16x128xf32>
    %249 = arith.addf %246, %248 : vector<16x128xf32>
    %250 = arith.addf %249, %237 : vector<16x128xf32>
    %cst_121 = arith.constant dense<0.000000e+00> : vector<16xf32>
    %251 = vector.multi_reduction <add>, %250, %cst_121 [1] : vector<16x128xf32> to vector<16xf32>
    %252 = vector.shape_cast %251 : vector<16xf32> to vector<16x1xf32>
    %cst_122 = arith.constant 1.280000e+02 : f32
    %253 = vector.broadcast %cst_122 : f32 to vector<16x1xf32>
    %254 = arith.divf %252, %253 : vector<16x1xf32>
    %255 = vector.broadcast %254 : vector<16x1xf32> to vector<16x128xf32>
    %256 = arith.subf %250, %255 : vector<16x128xf32>
    %257 = arith.mulf %256, %256 : vector<16x128xf32>
    %cst_123 = arith.constant dense<0.000000e+00> : vector<16xf32>
    %258 = vector.multi_reduction <add>, %257, %cst_123 [1] : vector<16x128xf32> to vector<16xf32>
    %259 = vector.shape_cast %258 : vector<16xf32> to vector<16x1xf32>
    %cst_124 = arith.constant 1.280000e+02 : f32
    %260 = vector.broadcast %cst_124 : f32 to vector<16x1xf32>
    %261 = arith.divf %259, %260 : vector<16x1xf32>
    %cst_125 = arith.constant 9.99999974E-6 : f32
    %262 = vector.broadcast %cst_125 : f32 to vector<16x1xf32>
    %263 = arith.addf %261, %262 : vector<16x1xf32>
    %264 = math.rsqrt %263 : vector<16x1xf32>
    %265 = vector.broadcast %264 : vector<16x1xf32> to vector<16x128xf32>
    %266 = arith.mulf %256, %265 : vector<16x128xf32>
    %c0_126 = arith.constant 0 : index
    %c0_127 = arith.constant 0 : index
    %267 = vector.load %arg26[%c0_126, %c0_127] : memref<1x128xf32, #tpu.memory_space<vmem>>, vector<1x128xf32>
    %268 = vector.broadcast %267 : vector<1x128xf32> to vector<16x128xf32>
    %269 = arith.mulf %266, %268 : vector<16x128xf32>
    %c0_128 = arith.constant 0 : index
    %c0_129 = arith.constant 0 : index
    %270 = vector.load %arg27[%c0_128, %c0_129] : memref<1x128xf32, #tpu.memory_space<vmem>>, vector<1x128xf32>
    %271 = vector.broadcast %270 : vector<1x128xf32> to vector<16x128xf32>
    %272 = arith.addf %269, %271 : vector<16x128xf32>
    %273 = vector.extract_strided_slice %272 {offsets = [0, 0], sizes = [8, 128], strides = [1, 1]} : vector<16x128xf32> to vector<8x128xf32>
    %274 = vector.extract_strided_slice %272 {offsets = [8, 0], sizes = [8, 128], strides = [1, 1]} : vector<16x128xf32> to vector<8x128xf32>
    %275 = arith.addf %273, %274 : vector<8x128xf32>
    %cst_130 = arith.constant 5.000000e-01 : f32
    %276 = vector.broadcast %cst_130 : f32 to vector<8x128xf32>
    %277 = arith.mulf %275, %276 : vector<8x128xf32>
    %c0_131 = arith.constant 0 : index
    %c0_132 = arith.constant 0 : index
    %278 = vector.load %arg28[%c0_131, %c0_132] : memref<8x128xf32, #tpu.memory_space<vmem>>, vector<8x128xf32>
    tpu.vector_store %arg28[%c0_131, %c0_132], %277 {strides = array<i32>} : memref<8x128xf32, #tpu.memory_space<vmem>>, vector<8x128xf32>,
    return
  }
}

</mosaic_0001>

<llo_original>
// kernel: prompt_modulator_with_attention.1
$region0: #{prompt_modulator_with_attention.1}
  #allocation0 [shape = 'u32[]', space=smem, size = 0x4, offset = 0x4, fixed_abs, tag = 'smem constant byte address 0x4 - core index']
  #allocation1 [shape = 'u32[72,128]{1,0:T(1,128)}', space=vmem, size = 0x9000, scoped, tag = 'internal scratch']
  %s0 = inlined_call_operand.vmem [shape: f32[8,128], index: 0, kind: input, shape index: {}]
  %s1 = inlined_call_operand.vmem [shape: f32[2,128], index: 1, kind: input, shape index: {}]
  %s2 = inlined_call_operand.vmem [shape: f32[4,2,16,128], index: 2, kind: input, shape index: {}]
  %s3 = inlined_call_operand.vmem [shape: f32[5], index: 3, kind: input, shape index: {}]
  %s4 = inlined_call_operand.vmem [shape: f32[128,32], index: 4, kind: input, shape index: {}]
  %s5 = inlined_call_operand.vmem [shape: f32[1,32], index: 5, kind: input, shape index: {}]
  %s6 = inlined_call_operand.vmem [shape: f32[32,128], index: 6, kind: input, shape index: {}]
  %s7 = inlined_call_operand.vmem [shape: f32[1,128], index: 7, kind: input, shape index: {}]
  %s8 = inlined_call_operand.vmem [shape: f32[128,32], index: 8, kind: input, shape index: {}]
  %s9 = inlined_call_operand.vmem [shape: f32[1,32], index: 9, kind: input, shape index: {}]
  %s10 = inlined_call_operand.vmem [shape: f32[32,128], index: 10, kind: input, shape index: {}]
  %s11 = inlined_call_operand.vmem [shape: f32[1,128], index: 11, kind: input, shape index: {}]
  %s12 = inlined_call_operand.vmem [shape: f32[128,128], index: 12, kind: input, shape index: {}]
  %s13 = inlined_call_operand.vmem [shape: f32[1,128], index: 13, kind: input, shape index: {}]
  %s14 = inlined_call_operand.vmem [shape: f32[128,128], index: 14, kind: input, shape index: {}]
  %s15 = inlined_call_operand.vmem [shape: f32[1,128], index: 15, kind: input, shape index: {}]
  %s16 = inlined_call_operand.vmem [shape: f32[128,128], index: 16, kind: input, shape index: {}]
  %s17 = inlined_call_operand.vmem [shape: f32[1,128], index: 17, kind: input, shape index: {}]
  %s18 = inlined_call_operand.vmem [shape: f32[128,128], index: 18, kind: input, shape index: {}]
  %s19 = inlined_call_operand.vmem [shape: f32[1,128], index: 19, kind: input, shape index: {}]
  %s20 = inlined_call_operand.vmem [shape: f32[1,128], index: 20, kind: input, shape index: {}]
  %s21 = inlined_call_operand.vmem [shape: f32[1,128], index: 21, kind: input, shape index: {}]
  %s22 = inlined_call_operand.vmem [shape: f32[128,32], index: 22, kind: input, shape index: {}]
  %s23 = inlined_call_operand.vmem [shape: f32[1,32], index: 23, kind: input, shape index: {}]
  %s24 = inlined_call_operand.vmem [shape: f32[32,128], index: 24, kind: input, shape index: {}]
  %s25 = inlined_call_operand.vmem [shape: f32[1,128], index: 25, kind: input, shape index: {}]
  %s26 = inlined_call_operand.vmem [shape: f32[1,128], index: 26, kind: input, shape index: {}]
  %s27 = inlined_call_operand.vmem [shape: f32[1,128], index: 27, kind: input, shape index: {}]
  %s28 = inlined_call_operand.hbm [shape: f32[8,128], index: 28, kind: output, shape index: {}]
  %s29 = sld [smem:[#allocation0]]
  $region126: #{prompt_modulator_with_attention.1} parent=0
    _
  %s31 = ssub.s32 1, %s29
  %s32 = scalar_select 0, %s31, %s29
  $region1: #{prompt_modulator_with_attention.1} parent=0
    #allocation2 [shape = 'u8[512]{0}', space=smem, size = 0x200, scoped, tag = 'input window, operand 3, single buffered']
    #allocation3 [shape = 's32[1]{0}', space=sflag, size = 0x4, scoped, tag = 'scoped memory for prompt_modulator_with_attention.1']
    #allocation4 [shape = 's32[1]{0}', space=sflag, size = 0x4, scoped, tag = 'scoped memory for prompt_modulator_with_attention.1']
    #allocation5 [shape = 'u8[4096]{0}', space=vmem, size = 0x1000, scoped, tag = 'output window, operand 0, single buffered']
    %33 = vsyncpa [#allocation4], 0
    %34 = vsyncpa [#allocation3], 0
    // Predicated region
    $region2: #{prompt_modulator_with_attention.1} parent=1 // pred_check
      _
    $region3: #{prompt_modulator_with_attention.1} parent=1 // pred_check_branch
      %36 = sbr.rel (0) target = $region5
    $region4: #{prompt_modulator_with_attention.1} parent=1 // pred_region
      _
    $region5: #{prompt_modulator_with_attention.1} parent=1 // pred_fallthru
      _
    // Predicated region
    $region6: #{prompt_modulator_with_attention.1} parent=1 // pred_check
      _
    $region7: #{prompt_modulator_with_attention.1} parent=1 // pred_check_branch
      %38 = sbr.rel (0) target = $region9
    $region8: #{prompt_modulator_with_attention.1} parent=1 // pred_region
      _
    $region9: #{prompt_modulator_with_attention.1} parent=1 // pred_fallthru
      _
    // Predicated region
    $region10: #{prompt_modulator_with_attention.1} parent=1 // pred_check
      _
    $region11: #{prompt_modulator_with_attention.1} parent=1 // pred_check_branch
      %40 = sbr.rel (0) target = $region13
    $region12: #{prompt_modulator_with_attention.1} parent=1 // pred_region
      _
    $region13: #{prompt_modulator_with_attention.1} parent=1 // pred_fallthru
      _
    // Predicated region
    $region14: #{prompt_modulator_with_attention.1} parent=1 // pred_check
      _
    $region15: #{prompt_modulator_with_attention.1} parent=1 // pred_check_branch
      %42 = sbr.rel (0) target = $region17
    $region16: #{prompt_modulator_with_attention.1} parent=1 // pred_region
      %44 = vsyncadd [#allocation4], 0
      %s46 = sshll.u32 %s3, 4
      %s47 = int_to_ptr.vmem [resolvable:$true] %s46
      %49 = dma.vmem_to_smem %s47, 16, [#allocation2], [#allocation4]
    $region17: #{prompt_modulator_with_attention.1} parent=1 // pred_fallthru
      _
    // Predicated region
    $region18: #{prompt_modulator_with_attention.1} parent=1 // pred_check
      _
    $region19: #{prompt_modulator_with_attention.1} parent=1 // pred_check_branch
      %51 = sbr.rel (0) target = $region21
    $region20: #{prompt_modulator_with_attention.1} parent=1 // pred_region
      _
    $region21: #{prompt_modulator_with_attention.1} parent=1 // pred_fallthru
      _
    // Predicated region
    $region22: #{prompt_modulator_with_attention.1} parent=1 // pred_check
      _
    $region23: #{prompt_modulator_with_attention.1} parent=1 // pred_check_branch
      %53 = sbr.rel (0) target = $region25
    $region24: #{prompt_modulator_with_attention.1} parent=1 // pred_region
      _
    $region25: #{prompt_modulator_with_attention.1} parent=1 // pred_fallthru
      _
    // Predicated region
    $region26: #{prompt_modulator_with_attention.1} parent=1 // pred_check
      _
    $region27: #{prompt_modulator_with_attention.1} parent=1 // pred_check_branch
      %55 = sbr.rel (0) target = $region29
    $region28: #{prompt_modulator_with_attention.1} parent=1 // pred_region
      _
    $region29: #{prompt_modulator_with_attention.1} parent=1 // pred_fallthru
      _
    // Predicated region
    $region30: #{prompt_modulator_with_attention.1} parent=1 // pred_check
      _
    $region31: #{prompt_modulator_with_attention.1} parent=1 // pred_check_branch
      %57 = sbr.rel (0) target = $region33
    $region32: #{prompt_modulator_with_attention.1} parent=1 // pred_region
      _
    $region33: #{prompt_modulator_with_attention.1} parent=1 // pred_fallthru
      _
    // Predicated region
    $region34: #{prompt_modulator_with_attention.1} parent=1 // pred_check
      _
    $region35: #{prompt_modulator_with_attention.1} parent=1 // pred_check_branch
      %59 = sbr.rel (0) target = $region37
    $region36: #{prompt_modulator_with_attention.1} parent=1 // pred_region
      _
    $region37: #{prompt_modulator_with_attention.1} parent=1 // pred_fallthru
      _
    // Predicated region
    $region38: #{prompt_modulator_with_attention.1} parent=1 // pred_check
      _
    $region39: #{prompt_modulator_with_attention.1} parent=1 // pred_check_branch
      %61 = sbr.rel (0) target = $region41
    $region40: #{prompt_modulator_with_attention.1} parent=1 // pred_region
      _
    $region41: #{prompt_modulator_with_attention.1} parent=1 // pred_fallthru
      _
    // Predicated region
    $region42: #{prompt_modulator_with_attention.1} parent=1 // pred_check
      _
    $region43: #{prompt_modulator_with_attention.1} parent=1 // pred_check_branch
      %63 = sbr.rel (0) target = $region45
    $region44: #{prompt_modulator_with_attention.1} parent=1 // pred_region
      _
    $region45: #{prompt_modulator_with_attention.1} parent=1 // pred_fallthru
      _
    // Predicated region
    $region46: #{prompt_modulator_with_attention.1} parent=1 // pred_check
      _
    $region47: #{prompt_modulator_with_attention.1} parent=1 // pred_check_branch
      %65 = sbr.rel (0) target = $region49
    $region48: #{prompt_modulator_with_attention.1} parent=1 // pred_region
      _
    $region49: #{prompt_modulator_with_attention.1} parent=1 // pred_fallthru
      _
    // Predicated region
    $region50: #{prompt_modulator_with_attention.1} parent=1 // pred_check
      _
    $region51: #{prompt_modulator_with_attention.1} parent=1 // pred_check_branch
      %67 = sbr.rel (0) target = $region53
    $region52: #{prompt_modulator_with_attention.1} parent=1 // pred_region
      _
    $region53: #{prompt_modulator_with_attention.1} parent=1 // pred_fallthru
      _
    // Predicated region
    $region54: #{prompt_modulator_with_attention.1} parent=1 // pred_check
      _
    $region55: #{prompt_modulator_with_attention.1} parent=1 // pred_check_branch
      %69 = sbr.rel (0) target = $region57
    $region56: #{prompt_modulator_with_attention.1} parent=1 // pred_region
      _
    $region57: #{prompt_modulator_with_attention.1} parent=1 // pred_fallthru
      _
    // Predicated region
    $region58: #{prompt_modulator_with_attention.1} parent=1 // pred_check
      _
    $region59: #{prompt_modulator_with_attention.1} parent=1 // pred_check_branch
      %71 = sbr.rel (0) target = $region61
    $region60: #{prompt_modulator_with_attention.1} parent=1 // pred_region
      _
    $region61: #{prompt_modulator_with_attention.1} parent=1 // pred_fallthru
      _
    // Predicated region
    $region62: #{prompt_modulator_with_attention.1} parent=1 // pred_check
      _
    $region63: #{prompt_modulator_with_attention.1} parent=1 // pred_check_branch
      %73 = sbr.rel (0) target = $region65
    $region64: #{prompt_modulator_with_attention.1} parent=1 // pred_region
      _
    $region65: #{prompt_modulator_with_attention.1} parent=1 // pred_fallthru
      _
    // Predicated region
    $region66: #{prompt_modulator_with_attention.1} parent=1 // pred_check
      _
    $region67: #{prompt_modulator_with_attention.1} parent=1 // pred_check_branch
      %75 = sbr.rel (0) target = $region69
    $region68: #{prompt_modulator_with_attention.1} parent=1 // pred_region
      _
    $region69: #{prompt_modulator_with_attention.1} parent=1 // pred_fallthru
      _
    // Predicated region
    $region70: #{prompt_modulator_with_attention.1} parent=1 // pred_check
      _
    $region71: #{prompt_modulator_with_attention.1} parent=1 // pred_check_branch
      %77 = sbr.rel (0) target = $region73
    $region72: #{prompt_modulator_with_attention.1} parent=1 // pred_region
      _
    $region73: #{prompt_modulator_with_attention.1} parent=1 // pred_fallthru
      _
    // Predicated region
    $region74: #{prompt_modulator_with_attention.1} parent=1 // pred_check
      _
    $region75: #{prompt_modulator_with_attention.1} parent=1 // pred_check_branch
      %79 = sbr.rel (0) target = $region77
    $region76: #{prompt_modulator_with_attention.1} parent=1 // pred_region
      _
    $region77: #{prompt_modulator_with_attention.1} parent=1 // pred_fallthru
      _
    // Predicated region
    $region78: #{prompt_modulator_with_attention.1} parent=1 // pred_check
      _
    $region79: #{prompt_modulator_with_attention.1} parent=1 // pred_check_branch
      %81 = sbr.rel (0) target = $region81
    $region80: #{prompt_modulator_with_attention.1} parent=1 // pred_region
      _
    $region81: #{prompt_modulator_with_attention.1} parent=1 // pred_fallthru
      _
    // Predicated region
    $region82: #{prompt_modulator_with_attention.1} parent=1 // pred_check
      _
    $region83: #{prompt_modulator_with_attention.1} parent=1 // pred_check_branch
      %83 = sbr.rel (0) target = $region85
    $region84: #{prompt_modulator_with_attention.1} parent=1 // pred_region
      _
    $region85: #{prompt_modulator_with_attention.1} parent=1 // pred_fallthru
      _
    // Predicated region
    $region86: #{prompt_modulator_with_attention.1} parent=1 // pred_check
      _
    $region87: #{prompt_modulator_with_attention.1} parent=1 // pred_check_branch
      %85 = sbr.rel (0) target = $region89
    $region88: #{prompt_modulator_with_attention.1} parent=1 // pred_region
      _
    $region89: #{prompt_modulator_with_attention.1} parent=1 // pred_fallthru
      _
    // Predicated region
    $region90: #{prompt_modulator_with_attention.1} parent=1 // pred_check
      _
    $region91: #{prompt_modulator_with_attention.1} parent=1 // pred_check_branch
      %87 = sbr.rel (0) target = $region93
    $region92: #{prompt_modulator_with_attention.1} parent=1 // pred_region
      _
    $region93: #{prompt_modulator_with_attention.1} parent=1 // pred_fallthru
      _
    // Predicated region
    $region94: #{prompt_modulator_with_attention.1} parent=1 // pred_check
      _
    $region95: #{prompt_modulator_with_attention.1} parent=1 // pred_check_branch
      %89 = sbr.rel (0) target = $region97
    $region96: #{prompt_modulator_with_attention.1} parent=1 // pred_region
      _
    $region97: #{prompt_modulator_with_attention.1} parent=1 // pred_fallthru
      _
    // Predicated region
    $region98: #{prompt_modulator_with_attention.1} parent=1 // pred_check
      _
    $region99: #{prompt_modulator_with_attention.1} parent=1 // pred_check_branch
      %91 = sbr.rel (0) target = $region101
    $region100: #{prompt_modulator_with_attention.1} parent=1 // pred_region
      _
    $region101: #{prompt_modulator_with_attention.1} parent=1 // pred_fallthru
      _
    // Predicated region
    $region102: #{prompt_modulator_with_attention.1} parent=1 // pred_check
      _
    $region103: #{prompt_modulator_with_attention.1} parent=1 // pred_check_branch
      %93 = sbr.rel (0) target = $region105
    $region104: #{prompt_modulator_with_attention.1} parent=1 // pred_region
      _
    $region105: #{prompt_modulator_with_attention.1} parent=1 // pred_fallthru
      _
    // Predicated region
    $region106: #{prompt_modulator_with_attention.1} parent=1 // pred_check
      _
    $region107: #{prompt_modulator_with_attention.1} parent=1 // pred_check_branch
      %95 = sbr.rel (0) target = $region109
    $region108: #{prompt_modulator_with_attention.1} parent=1 // pred_region
      _
    $region109: #{prompt_modulator_with_attention.1} parent=1 // pred_fallthru
      _
    // Predicated region
    $region110: #{prompt_modulator_with_attention.1} parent=1 // pred_check
      _
    $region111: #{prompt_modulator_with_attention.1} parent=1 // pred_check_branch
      %97 = sbr.rel (0) target = $region113
    $region112: #{prompt_modulator_with_attention.1} parent=1 // pred_region
      _
    $region113: #{prompt_modulator_with_attention.1} parent=1 // pred_fallthru
      _
    // Predicated region
    $region114: #{prompt_modulator_with_attention.1} parent=1 // pred_check
      _
    $region115: #{prompt_modulator_with_attention.1} parent=1 // pred_check_branch
      %99 = sbr.rel (0) target = $region117
    $region116: #{prompt_modulator_with_attention.1} parent=1 // pred_region
      %101 = dma.done [#allocation4], 16
    $region117: #{prompt_modulator_with_attention.1} parent=1 // pred_fallthru
      _
    %102 = sfence
    %v103 = vld [vmem:[%s0] sm:$0xff]
    %v104 = vld [vmem:[%s1] sm:$0x3]
    %v105 = vld [vmem:[%s4] sm:$0xff]
    %v106 = vld [vmem:[%s4 + $0x8] sm:$0xff]
    %v107 = vld [vmem:[%s4 + $0x10] sm:$0xff]
    %v108 = vld [vmem:[%s4 + $0x18] sm:$0xff]
    %v109 = vld [vmem:[%s4 + $0x20] sm:$0xff]
    %v110 = vld [vmem:[%s4 + $0x28] sm:$0xff]
    %v111 = vld [vmem:[%s4 + $0x30] sm:$0xff]
    %v112 = vld [vmem:[%s4 + $0x38] sm:$0xff]
    %v113 = vld [vmem:[%s4 + $0x40] sm:$0xff]
    %v114 = vld [vmem:[%s4 + $0x48] sm:$0xff]
    %v115 = vld [vmem:[%s4 + $0x50] sm:$0xff]
    %v116 = vld [vmem:[%s4 + $0x58] sm:$0xff]
    %v117 = vld [vmem:[%s4 + $0x60] sm:$0xff]
    %v118 = vld [vmem:[%s4 + $0x68] sm:$0xff]
    %v119 = vld [vmem:[%s4 + $0x70] sm:$0xff]
    %v120 = vld [vmem:[%s4 + $0x78] sm:$0xff]
    %v121 = vld [vmem:[%s5] sm:$0x1]
    %v123 = vperm.slane %v121, 0
    %125 = vmatpush.msra.mxu0 %v120
    %126 = vmatpush.msra.mxu0 %v119
    %127 = vmatpush.msra.mxu0 %v118
    %128 = vmatpush.msra.mxu0 %v117
    %129 = vmatpush.msra.mxu0 %v116
    %130 = vmatpush.msra.mxu0 %v115
    %131 = vmatpush.msra.mxu0 %v114
    %132 = vmatpush.msra.mxu0 %v113
    %133 = vmatpush.msra.mxu0 %v112
    %134 = vmatpush.msra.mxu0 %v111
    %135 = vmatpush.msra.mxu0 %v110
    %136 = vmatpush.msra.mxu0 %v109
    %137 = vmatpush.msra.mxu0 %v108
    %138 = vmatpush.msra.mxu0 %v107
    %139 = vmatpush.msra.mxu0 %v106
    %140 = vmatpush.msra.mxu0 %v105
    %141 = vmatmul.f32.gmra.mxu0 %v104
    %v142 = vpop.f32.mrf.mxu0
    %v143 = vadd.f32 %v123, %v142
    %144 = vdwg.mxu0
    %v145 = vmax.f32 %v143, 0.0
    %v146 = vld [vmem:[%s6] sm:$0xff]
    %v147 = vld [vmem:[%s6 + $0x8] sm:$0xff]
    %v148 = vld [vmem:[%s6 + $0x10] sm:$0xff]
    %v149 = vld [vmem:[%s6 + $0x18] sm:$0xff]
    %v150 = vld [vmem:[%s7] sm:$0x1]
    %v152 = vperm.slane %v150, 0
    %vm154 = vcmask 261120
    %v156 = vsel %vm154, %v145, 0
    %158 = vmatpush.msra.mxu0 0.0
    %159 = vmatpush.msra.mxu0 0.0
    %160 = vmatpush.msra.mxu0 0.0
    %161 = vmatpush.msra.mxu0 0.0
    %162 = vmatpush.msra.mxu0 0.0
    %163 = vmatpush.msra.mxu0 0.0
    %164 = vmatpush.msra.mxu0 0.0
    %165 = vmatpush.msra.mxu0 0.0
    %166 = vmatpush.msra.mxu0 0.0
    %167 = vmatpush.msra.mxu0 0.0
    %168 = vmatpush.msra.mxu0 0.0
    %169 = vmatpush.msra.mxu0 0.0
    %170 = vmatpush.msra.mxu0 %v149
    %171 = vmatpush.msra.mxu0 %v148
    %172 = vmatpush.msra.mxu0 %v147
    %173 = vmatpush.msra.mxu0 %v146
    %174 = vmatmul.f32.gmra.mxu0 %v156
    %v175 = vpop.f32.mrf.mxu0
    %v176 = vadd.f32 %v152, %v175
    %177 = vdwg.mxu0
    %v178 = vld [vmem:[%s8] sm:$0xff]
    %v179 = vld [vmem:[%s8 + $0x8] sm:$0xff]
    %v180 = vld [vmem:[%s8 + $0x10] sm:$0xff]
    %v181 = vld [vmem:[%s8 + $0x18] sm:$0xff]
    %v182 = vld [vmem:[%s8 + $0x20] sm:$0xff]
    %v183 = vld [vmem:[%s8 + $0x28] sm:$0xff]
    %v184 = vld [vmem:[%s8 + $0x30] sm:$0xff]
    %v185 = vld [vmem:[%s8 + $0x38] sm:$0xff]
    %v186 = vld [vmem:[%s8 + $0x40] sm:$0xff]
    %v187 = vld [vmem:[%s8 + $0x48] sm:$0xff]
    %v188 = vld [vmem:[%s8 + $0x50] sm:$0xff]
    %v189 = vld [vmem:[%s8 + $0x58] sm:$0xff]
    %v190 = vld [vmem:[%s8 + $0x60] sm:$0xff]
    %v191 = vld [vmem:[%s8 + $0x68] sm:$0xff]
    %v192 = vld [vmem:[%s8 + $0x70] sm:$0xff]
    %v193 = vld [vmem:[%s8 + $0x78] sm:$0xff]
    %v194 = vld [vmem:[%s9] sm:$0x1]
    %v196 = vperm.slane %v194, 0
    %198 = vmatpush.msra.mxu0 %v193
    %199 = vmatpush.msra.mxu0 %v192
    %200 = vmatpush.msra.mxu0 %v191
    %201 = vmatpush.msra.mxu0 %v190
    %202 = vmatpush.msra.mxu0 %v189
    %203 = vmatpush.msra.mxu0 %v188
    %204 = vmatpush.msra.mxu0 %v187
    %205 = vmatpush.msra.mxu0 %v186
    %206 = vmatpush.msra.mxu0 %v185
    %207 = vmatpush.msra.mxu0 %v184
    %208 = vmatpush.msra.mxu0 %v183
    %209 = vmatpush.msra.mxu0 %v182
    %210 = vmatpush.msra.mxu0 %v181
    %211 = vmatpush.msra.mxu0 %v180
    %212 = vmatpush.msra.mxu0 %v179
    %213 = vmatpush.msra.mxu0 %v178
    %214 = vmatmul.f32.gmra.mxu0 %v104
    %v215 = vpop.f32.mrf.mxu0
    %v216 = vadd.f32 %v196, %v215
    %217 = vdwg.mxu0
    %v218 = vmax.f32 %v216, 0.0
    %v219 = vld [vmem:[%s10] sm:$0xff]
    %v220 = vld [vmem:[%s10 + $0x8] sm:$0xff]
    %v221 = vld [vmem:[%s10 + $0x10] sm:$0xff]
    %v222 = vld [vmem:[%s10 + $0x18] sm:$0xff]
    %v223 = vld [vmem:[%s11] sm:$0x1]
    %v225 = vperm.slane %v223, 0
    %v228 = vsel %vm154, %v218, 0
    %230 = vmatpush.msra.mxu0 0.0
    %231 = vmatpush.msra.mxu0 0.0
    %232 = vmatpush.msra.mxu0 0.0
    %233 = vmatpush.msra.mxu0 0.0
    %234 = vmatpush.msra.mxu0 0.0
    %235 = vmatpush.msra.mxu0 0.0
    %236 = vmatpush.msra.mxu0 0.0
    %237 = vmatpush.msra.mxu0 0.0
    %238 = vmatpush.msra.mxu0 0.0
    %239 = vmatpush.msra.mxu0 0.0
    %240 = vmatpush.msra.mxu0 0.0
    %241 = vmatpush.msra.mxu0 0.0
    %242 = vmatpush.msra.mxu0 %v222
    %243 = vmatpush.msra.mxu0 %v221
    %244 = vmatpush.msra.mxu0 %v220
    %245 = vmatpush.msra.mxu0 %v219
    %246 = vmatmul.f32.gmra.mxu0 %v228
    %v247 = vpop.f32.mrf.mxu0
    %v248 = vadd.f32 %v225, %v247
    %249 = vdwg.mxu0
    %v251 = vrot.slane %v176, 1
    %v252 = vperm.slane %v176, 0
    %v253 = vperm.slane %v251, 0
    %v256 = vmul.f32 %v252, %v103
    %v257 = vmul.f32 %v253, %v103
    %v259 = vrot.slane %v248, 1
    %v260 = vperm.slane %v248, 0
    %v261 = vperm.slane %v259, 0
    %v264 = vadd.f32 %v256, %v260
    %v265 = vadd.f32 %v257, %v261
    %s266 = sld [smem:[#allocation2]]
    %v267 = vld [vmem:[%s2] sm:$0xff]
    %v268 = vld [vmem:[%s2 + $0x8] sm:$0xff]
    %v269 = vld [vmem:[%s2 + $0x10] sm:$0xff]
    %v270 = vld [vmem:[%s2 + $0x18] sm:$0xff]
    %v271 = vstv %s266
    %v272 = vmul.f32 %v271, %v267
    %v273 = vmul.f32 %v271, %v268
    %v274 = vmul.f32 %v271, %v269
    %v275 = vmul.f32 %v271, %v270
    %s276 = sld [smem:[#allocation2 + $0x1]]
    %s277 = scalar_lea.vmem %s2, 32
    %v278 = vld [vmem:[%s277] sm:$0xff]
    %v279 = vld [vmem:[%s277 + $0x8] sm:$0xff]
    %v280 = vld [vmem:[%s277 + $0x10] sm:$0xff]
    %v281 = vld [vmem:[%s277 + $0x18] sm:$0xff]
    %v282 = vstv %s276
    %v283 = vmul.f32 %v282, %v278
    %v284 = vmul.f32 %v282, %v279
    %v285 = vmul.f32 %v282, %v280
    %v286 = vmul.f32 %v282, %v281
    %v287 = vadd.f32 %v272, %v283
    %v288 = vadd.f32 %v273, %v284
    %v289 = vadd.f32 %v274, %v285
    %v290 = vadd.f32 %v275, %v286
    %s291 = sld [smem:[#allocation2 + $0x2]]
    %s292 = scalar_lea.vmem %s2, 64
    %v293 = vld [vmem:[%s292] sm:$0xff]
    %v294 = vld [vmem:[%s292 + $0x8] sm:$0xff]
    %v295 = vld [vmem:[%s292 + $0x10] sm:$0xff]
    %v296 = vld [vmem:[%s292 + $0x18] sm:$0xff]
    %v297 = vstv %s291
    %v298 = vmul.f32 %v297, %v293
    %v299 = vmul.f32 %v297, %v294
    %v300 = vmul.f32 %v297, %v295
    %v301 = vmul.f32 %v297, %v296
    %v302 = vadd.f32 %v287, %v298
    %v303 = vadd.f32 %v288, %v299
    %v304 = vadd.f32 %v289, %v300
    %v305 = vadd.f32 %v290, %v301
    %s306 = sld [smem:[#allocation2 + $0x3]]
    %s307 = scalar_lea.vmem %s2, 96
    %v308 = vld [vmem:[%s307] sm:$0xff]
    %v309 = vld [vmem:[%s307 + $0x8] sm:$0xff]
    %v310 = vld [vmem:[%s307 + $0x10] sm:$0xff]
    %v311 = vld [vmem:[%s307 + $0x18] sm:$0xff]
    %v312 = vstv %s306
    %v313 = vmul.f32 %v312, %v308
    %v314 = vmul.f32 %v312, %v309
    %v315 = vmul.f32 %v312, %v310
    %v316 = vmul.f32 %v312, %v311
    %v317 = vadd.f32 %v302, %v313
    %v318 = vadd.f32 %v303, %v314
    %v319 = vadd.f32 %v304, %v315
    %v320 = vadd.f32 %v305, %v316
    %s321 = sld [smem:[#allocation2 + $0x4]]
    %v322 = vstv %s321
    %v323 = vadd.f32 %v317, %v322
    %v324 = vadd.f32 %v318, %v322
    %v325 = vadd.f32 %v319, %v322
    %v326 = vadd.f32 %v320, %v322
    %v327 = vld [vmem:[%s12] sm:$0xff]
    %v328 = vld [vmem:[%s12 + $0x8] sm:$0xff]
    %v329 = vld [vmem:[%s12 + $0x10] sm:$0xff]
    %v330 = vld [vmem:[%s12 + $0x18] sm:$0xff]
    %v331 = vld [vmem:[%s12 + $0x20] sm:$0xff]
    %v332 = vld [vmem:[%s12 + $0x28] sm:$0xff]
    %v333 = vld [vmem:[%s12 + $0x30] sm:$0xff]
    %v334 = vld [vmem:[%s12 + $0x38] sm:$0xff]
    %v335 = vld [vmem:[%s12 + $0x40] sm:$0xff]
    %v336 = vld [vmem:[%s12 + $0x48] sm:$0xff]
    %v337 = vld [vmem:[%s12 + $0x50] sm:$0xff]
    %v338 = vld [vmem:[%s12 + $0x58] sm:$0xff]
    %v339 = vld [vmem:[%s12 + $0x60] sm:$0xff]
    %v340 = vld [vmem:[%s12 + $0x68] sm:$0xff]
    %v341 = vld [vmem:[%s12 + $0x70] sm:$0xff]
    %v342 = vld [vmem:[%s12 + $0x78] sm:$0xff]
    %v343 = vld [vmem:[%s13] sm:$0x1]
    %v345 = vperm.slane %v343, 0
    %347 = vmatpush.msra.mxu0 %v342
    %348 = vmatpush.msra.mxu0 %v341
    %349 = vmatpush.msra.mxu0 %v340
    %350 = vmatpush.msra.mxu0 %v339
    %351 = vmatpush.msra.mxu0 %v338
    %352 = vmatpush.msra.mxu0 %v337
    %353 = vmatpush.msra.mxu0 %v336
    %354 = vmatpush.msra.mxu0 %v335
    %355 = vmatpush.msra.mxu0 %v334
    %356 = vmatpush.msra.mxu0 %v333
    %357 = vmatpush.msra.mxu0 %v332
    %358 = vmatpush.msra.mxu0 %v331
    %359 = vmatpush.msra.mxu0 %v330
    %360 = vmatpush.msra.mxu0 %v329
    %361 = vmatpush.msra.mxu0 %v328
    %362 = vmatpush.msra.mxu0 %v327
    %363 = vmatmul.f32.gmra.mxu0 %v264
    %v364 = vpop.f32.mrf.mxu0
    %v365 = vadd.f32 %v345, %v364
    %366 = vmatmul.f32.gmra.mxu0 %v265
    %v367 = vpop.f32.mrf.mxu0
    %v368 = vadd.f32 %v345, %v367
    %369 = vdwg.mxu0
    %v370 = vld [vmem:[%s14] sm:$0xff]
    %v371 = vld [vmem:[%s14 + $0x8] sm:$0xff]
    %v372 = vld [vmem:[%s14 + $0x10] sm:$0xff]
    %v373 = vld [vmem:[%s14 + $0x18] sm:$0xff]
    %v374 = vld [vmem:[%s14 + $0x20] sm:$0xff]
    %v375 = vld [vmem:[%s14 + $0x28] sm:$0xff]
    %v376 = vld [vmem:[%s14 + $0x30] sm:$0xff]
    %v377 = vld [vmem:[%s14 + $0x38] sm:$0xff]
    %v378 = vld [vmem:[%s14 + $0x40] sm:$0xff]
    %v379 = vld [vmem:[%s14 + $0x48] sm:$0xff]
    %v380 = vld [vmem:[%s14 + $0x50] sm:$0xff]
    %v381 = vld [vmem:[%s14 + $0x58] sm:$0xff]
    %v382 = vld [vmem:[%s14 + $0x60] sm:$0xff]
    %v383 = vld [vmem:[%s14 + $0x68] sm:$0xff]
    %v384 = vld [vmem:[%s14 + $0x70] sm:$0xff]
    %v385 = vld [vmem:[%s14 + $0x78] sm:$0xff]
    %v386 = vld [vmem:[%s15] sm:$0x1]
    %v388 = vperm.slane %v386, 0
    %390 = vmatpush.msra.mxu0 %v385
    %391 = vmatpush.msra.mxu0 %v384
    %392 = vmatpush.msra.mxu0 %v383
    %393 = vmatpush.msra.mxu0 %v382
    %394 = vmatpush.msra.mxu0 %v381
    %395 = vmatpush.msra.mxu0 %v380
    %396 = vmatpush.msra.mxu0 %v379
    %397 = vmatpush.msra.mxu0 %v378
    %398 = vmatpush.msra.mxu0 %v377
    %399 = vmatpush.msra.mxu0 %v376
    %400 = vmatpush.msra.mxu0 %v375
    %401 = vmatpush.msra.mxu0 %v374
    %402 = vmatpush.msra.mxu0 %v373
    %403 = vmatpush.msra.mxu0 %v372
    %404 = vmatpush.msra.mxu0 %v371
    %405 = vmatpush.msra.mxu0 %v370
    %406 = vmatmul.f32.gmra.mxu0 %v323
    %v407 = vpop.f32.mrf.mxu0
    %v408 = vadd.f32 %v388, %v407
    %409 = vmatmul.f32.gmra.mxu0 %v324
    %v410 = vpop.f32.mrf.mxu0
    %v411 = vadd.f32 %v388, %v410
    %412 = vmatmul.f32.gmra.mxu0 %v325
    %v413 = vpop.f32.mrf.mxu0
    %v414 = vadd.f32 %v388, %v413
    %415 = vmatmul.f32.gmra.mxu0 %v326
    %v416 = vpop.f32.mrf.mxu0
    %v417 = vadd.f32 %v388, %v416
    %418 = vdwg.mxu0
    %v419 = vld [vmem:[%s16] sm:$0xff]
    %v420 = vld [vmem:[%s16 + $0x8] sm:$0xff]
    %v421 = vld [vmem:[%s16 + $0x10] sm:$0xff]
    %v422 = vld [vmem:[%s16 + $0x18] sm:$0xff]
    %v423 = vld [vmem:[%s16 + $0x20] sm:$0xff]
    %v424 = vld [vmem:[%s16 + $0x28] sm:$0xff]
    %v425 = vld [vmem:[%s16 + $0x30] sm:$0xff]
    %v426 = vld [vmem:[%s16 + $0x38] sm:$0xff]
    %v427 = vld [vmem:[%s16 + $0x40] sm:$0xff]
    %v428 = vld [vmem:[%s16 + $0x48] sm:$0xff]
    %v429 = vld [vmem:[%s16 + $0x50] sm:$0xff]
    %v430 = vld [vmem:[%s16 + $0x58] sm:$0xff]
    %v431 = vld [vmem:[%s16 + $0x60] sm:$0xff]
    %v432 = vld [vmem:[%s16 + $0x68] sm:$0xff]
    %v433 = vld [vmem:[%s16 + $0x70] sm:$0xff]
    %v434 = vld [vmem:[%s16 + $0x78] sm:$0xff]
    %v435 = vld [vmem:[%s17] sm:$0x1]
    %v437 = vperm.slane %v435, 0
    %439 = vmatpush.msra.mxu0 %v434
    %440 = vmatpush.msra.mxu0 %v433
    %441 = vmatpush.msra.mxu0 %v432
    %442 = vmatpush.msra.mxu0 %v431
    %443 = vmatpush.msra.mxu0 %v430
    %444 = vmatpush.msra.mxu0 %v429
    %445 = vmatpush.msra.mxu0 %v428
    %446 = vmatpush.msra.mxu0 %v427
    %447 = vmatpush.msra.mxu0 %v426
    %448 = vmatpush.msra.mxu0 %v425
    %449 = vmatpush.msra.mxu0 %v424
    %450 = vmatpush.msra.mxu0 %v423
    %451 = vmatpush.msra.mxu0 %v422
    %452 = vmatpush.msra.mxu0 %v421
    %453 = vmatpush.msra.mxu0 %v420
    %454 = vmatpush.msra.mxu0 %v419
    %455 = vmatmul.f32.gmra.mxu0 %v323
    %v456 = vpop.f32.mrf.mxu0
    %v457 = vadd.f32 %v437, %v456
    %458 = vmatmul.f32.gmra.mxu0 %v324
    %v459 = vpop.f32.mrf.mxu0
    %v460 = vadd.f32 %v437, %v459
    %461 = vmatmul.f32.gmra.mxu0 %v325
    %v462 = vpop.f32.mrf.mxu0
    %v463 = vadd.f32 %v437, %v462
    %464 = vmatmul.f32.gmra.mxu0 %v326
    %v465 = vpop.f32.mrf.mxu0
    %v466 = vadd.f32 %v437, %v465
    %467 = vdwg.mxu0
    %vm468 = vcmask 130048
    %v470 = vsel %vm468, %v365, 0
    %v473 = vsel %vm468, %v408, 0
    %v476 = vsel %vm468, %v411, 0
    %478 = vmatpush.xpose.msra.mxu0 0.0
    %479 = vmatpush.xpose.msra.mxu0 0.0
    %480 = vmatpush.xpose.msra.mxu0 0.0
    %481 = vmatpush.xpose.msra.mxu0 0.0
    %482 = vmatpush.xpose.msra.mxu0 0.0
    %483 = vmatpush.xpose.msra.mxu0 0.0
    %484 = vmatpush.xpose.msra.mxu0 0.0
    %485 = vmatpush.xpose.msra.mxu0 0.0
    %486 = vmatpush.xpose.msra.mxu0 0.0
    %487 = vmatpush.xpose.msra.mxu0 0.0
    %488 = vmatpush.xpose.msra.mxu0 0.0
    %489 = vmatpush.xpose.msra.mxu0 0.0
    %490 = vmatpush.xpose.msra.mxu0 0.0
    %491 = vmatpush.xpose.msra.mxu0 0.0
    %492 = vmatpush.xpose.msra.mxu0 %v476
    %493 = vmatpush.xpose.msra.mxu0 %v473
    %494 = vmatmul.f32.gmra.mxu0 %v470
    %v495 = vpop.f32.mrf.mxu0
    %v496 = vadd.f32 0.0, %v495
    %497 = vdwg.mxu0
    %v499 = vsel %vm468, %v368, 0
    %v502 = vsel %vm468, %v414, 0
    %v505 = vsel %vm468, %v417, 0
    %507 = vmatpush.xpose.msra.mxu0 0.0
    %508 = vmatpush.xpose.msra.mxu0 0.0
    %509 = vmatpush.xpose.msra.mxu0 0.0
    %510 = vmatpush.xpose.msra.mxu0 0.0
    %511 = vmatpush.xpose.msra.mxu0 0.0
    %512 = vmatpush.xpose.msra.mxu0 0.0
    %513 = vmatpush.xpose.msra.mxu0 0.0
    %514 = vmatpush.xpose.msra.mxu0 0.0
    %515 = vmatpush.xpose.msra.mxu0 0.0
    %516 = vmatpush.xpose.msra.mxu0 0.0
    %517 = vmatpush.xpose.msra.mxu0 0.0
    %518 = vmatpush.xpose.msra.mxu0 0.0
    %519 = vmatpush.xpose.msra.mxu0 0.0
    %520 = vmatpush.xpose.msra.mxu0 0.0
    %521 = vmatpush.xpose.msra.mxu0 %v505
    %522 = vmatpush.xpose.msra.mxu0 %v502
    %523 = vmatmul.f32.gmra.mxu0 %v499
    %v524 = vpop.f32.mrf.mxu0
    %v525 = vadd.f32 0.0, %v524
    %526 = vdwg.mxu0
    %v527 = vmul.f32 %v496, 0.25
    %v528 = vmul.f32 %v525, 0.25
    %v529 = vsel %vm468, %v527, -inf
    %530 = vmax.xlane.f32.xlu0 %v529
    %v531 = vpop.xlane.xlu0 %530
    %v532 = vsel %vm468, %v528, -inf
    %533 = vmax.xlane.f32.xlu0 %v532
    %v534 = vpop.xlane.xlu0 %533
    %v535 = vsub.f32 %v527, %v531
    %v536 = vsub.f32 %v528, %v534
    %v537 = vmul.f32 %v535, 1.442695
    %v538 = vpow.pop %v537
    %v539 = vmul.f32 %v536, 1.442695
    %v540 = vpow.pop %v539
    %v541 = vsel %vm468, %v538, 0.0
    %542 = vadd.xlane.f32.xlu0 %v541
    %v543 = vpop.xlane.xlu0 %542
    %v544 = vsel %vm468, %v540, 0.0
    %545 = vadd.xlane.f32.xlu0 %v544
    %v546 = vpop.xlane.xlu0 %545
    %v547 = vrcp.pop %v543
    %v548 = vmul.f32 %v543, %v547
    %v549 = vsub.f32 1.0, %v548
    %v550 = vmul.f32 %v547, %v549
    %v551 = vadd.f32 %v547, %v550
    %vm552 = vweird.f32 %v543
    %vm553 = vweird.f32 %v547
    %vm554 = vmor %vm552, %vm553
    %v555 = vsel %vm554, %v547, %v551
    %v556 = vand.u32 2147483647, %v543
    %vm557 = vcmp.eq.f32.partialorder %v556, 8.507059e+37
    %v558 = vand.u32 %v543, 2147483648
    %v559 = vor.u32 1.1754944e-38, %v558
    %v560 = vsel %vm557, %v559, %v555
    %v561 = vmul.f32 %v538, %v560
    %v562 = vrcp.pop %v546
    %v563 = vmul.f32 %v546, %v562
    %v564 = vsub.f32 1.0, %v563
    %v565 = vmul.f32 %v562, %v564
    %v566 = vadd.f32 %v562, %v565
    %vm567 = vweird.f32 %v546
    %vm568 = vweird.f32 %v562
    %vm569 = vmor %vm567, %vm568
    %v570 = vsel %vm569, %v562, %v566
    %v571 = vand.u32 2147483647, %v546
    %vm572 = vcmp.eq.f32.partialorder %v571, 8.507059e+37
    %v573 = vand.u32 %v546, 2147483648
    %v574 = vor.u32 1.1754944e-38, %v573
    %v575 = vsel %vm572, %v574, %v570
    %v576 = vmul.f32 %v540, %v575
    %v578 = vsel %vm468, %v561, 0
    %580 = vmatpush.msra.mxu0 0.0
    %581 = vmatpush.msra.mxu0 0.0
    %582 = vmatpush.msra.mxu0 0.0
    %583 = vmatpush.msra.mxu0 0.0
    %584 = vmatpush.msra.mxu0 0.0
    %585 = vmatpush.msra.mxu0 0.0
    %586 = vmatpush.msra.mxu0 0.0
    %587 = vmatpush.msra.mxu0 0.0
    %588 = vmatpush.msra.mxu0 0.0
    %589 = vmatpush.msra.mxu0 0.0
    %590 = vmatpush.msra.mxu0 0.0
    %591 = vmatpush.msra.mxu0 0.0
    %592 = vmatpush.msra.mxu0 0.0
    %593 = vmatpush.msra.mxu0 0.0
    %594 = vmatpush.msra.mxu0 %v460
    %595 = vmatpush.msra.mxu0 %v457
    %596 = vmatmul.f32.gmra.mxu0 %v578
    %v597 = vpop.f32.mrf.mxu0
    %v598 = vadd.f32 0.0, %v597
    %599 = vdwg.mxu0
    %v601 = vsel %vm468, %v576, 0
    %603 = vmatpush.msra.mxu0 0.0
    %604 = vmatpush.msra.mxu0 0.0
    %605 = vmatpush.msra.mxu0 0.0
    %606 = vmatpush.msra.mxu0 0.0
    %607 = vmatpush.msra.mxu0 0.0
    %608 = vmatpush.msra.mxu0 0.0
    %609 = vmatpush.msra.mxu0 0.0
    %610 = vmatpush.msra.mxu0 0.0
    %611 = vmatpush.msra.mxu0 0.0
    %612 = vmatpush.msra.mxu0 0.0
    %613 = vmatpush.msra.mxu0 0.0
    %614 = vmatpush.msra.mxu0 0.0
    %615 = vmatpush.msra.mxu0 0.0
    %616 = vmatpush.msra.mxu0 0.0
    %617 = vmatpush.msra.mxu0 %v466
    %618 = vmatpush.msra.mxu0 %v463
    %619 = vmatmul.f32.gmra.mxu0 %v601
    %v620 = vpop.f32.mrf.mxu0
    %v621 = vadd.f32 0.0, %v620
    %622 = vdwg.mxu0
    %623 = vrot.lane.b32.xlu0 %v365, 112
    %v624 = vpop.permute.xlu0 %623
    %625 = vrot.lane.b32.xlu0 %v408, 112
    %v626 = vpop.permute.xlu0 %625
    %627 = vrot.lane.b32.xlu0 %v411, 112
    %v628 = vpop.permute.xlu0 %627
    %v629 = vsel %vm468, %v624, 0
    %v631 = vsel %vm468, %v626, 0
    %v633 = vsel %vm468, %v628, 0
    %635 = vmatpush.xpose.msra.mxu0 0.0
    %636 = vmatpush.xpose.msra.mxu0 0.0
    %637 = vmatpush.xpose.msra.mxu0 0.0
    %638 = vmatpush.xpose.msra.mxu0 0.0
    %639 = vmatpush.xpose.msra.mxu0 0.0
    %640 = vmatpush.xpose.msra.mxu0 0.0
    %641 = vmatpush.xpose.msra.mxu0 0.0
    %642 = vmatpush.xpose.msra.mxu0 0.0
    %643 = vmatpush.xpose.msra.mxu0 0.0
    %644 = vmatpush.xpose.msra.mxu0 0.0
    %645 = vmatpush.xpose.msra.mxu0 0.0
    %646 = vmatpush.xpose.msra.mxu0 0.0
    %647 = vmatpush.xpose.msra.mxu0 0.0
    %648 = vmatpush.xpose.msra.mxu0 0.0
    %649 = vmatpush.xpose.msra.mxu0 %v633
    %650 = vmatpush.xpose.msra.mxu0 %v631
    %651 = vmatmul.f32.gmra.mxu0 %v629
    %v652 = vpop.f32.mrf.mxu0
    %v653 = vadd.f32 0.0, %v652
    %654 = vdwg.mxu0
    %655 = vrot.lane.b32.xlu0 %v368, 112
    %v656 = vpop.permute.xlu0 %655
    %657 = vrot.lane.b32.xlu0 %v414, 112
    %v658 = vpop.permute.xlu0 %657
    %659 = vrot.lane.b32.xlu0 %v417, 112
    %v660 = vpop.permute.xlu0 %659
    %v661 = vsel %vm468, %v656, 0
    %v663 = vsel %vm468, %v658, 0
    %v665 = vsel %vm468, %v660, 0
    %667 = vmatpush.xpose.msra.mxu0 0.0
    %668 = vmatpush.xpose.msra.mxu0 0.0
    %669 = vmatpush.xpose.msra.mxu0 0.0
    %670 = vmatpush.xpose.msra.mxu0 0.0
    %671 = vmatpush.xpose.msra.mxu0 0.0
    %672 = vmatpush.xpose.msra.mxu0 0.0
    %673 = vmatpush.xpose.msra.mxu0 0.0
    %674 = vmatpush.xpose.msra.mxu0 0.0
    %675 = vmatpush.xpose.msra.mxu0 0.0
    %676 = vmatpush.xpose.msra.mxu0 0.0
    %677 = vmatpush.xpose.msra.mxu0 0.0
    %678 = vmatpush.xpose.msra.mxu0 0.0
    %679 = vmatpush.xpose.msra.mxu0 0.0
    %680 = vmatpush.xpose.msra.mxu0 0.0
    %681 = vmatpush.xpose.msra.mxu0 %v665
    %682 = vmatpush.xpose.msra.mxu0 %v663
    %683 = vmatmul.f32.gmra.mxu0 %v661
    %v684 = vpop.f32.mrf.mxu0
    %v685 = vadd.f32 0.0, %v684
    %686 = vdwg.mxu0
    %v687 = vmul.f32 %v653, 0.25
    %v688 = vmul.f32 %v685, 0.25
    %v689 = vsel %vm468, %v687, -inf
    %690 = vmax.xlane.f32.xlu0 %v689
    %v691 = vpop.xlane.xlu0 %690
    %v692 = vsel %vm468, %v688, -inf
    %693 = vmax.xlane.f32.xlu0 %v692
    %v694 = vpop.xlane.xlu0 %693
    %v695 = vsub.f32 %v687, %v691
    %v696 = vsub.f32 %v688, %v694
    %v697 = vmul.f32 %v695, 1.442695
    %v698 = vpow.pop %v697
    %v699 = vmul.f32 %v696, 1.442695
    %v700 = vpow.pop %v699
    %v701 = vsel %vm468, %v698, 0.0
    %702 = vadd.xlane.f32.xlu0 %v701
    %v703 = vpop.xlane.xlu0 %702
    %v704 = vsel %vm468, %v700, 0.0
    %705 = vadd.xlane.f32.xlu0 %v704
    %v706 = vpop.xlane.xlu0 %705
    %v707 = vrcp.pop %v703
    %v708 = vmul.f32 %v703, %v707
    %v709 = vsub.f32 1.0, %v708
    %v710 = vmul.f32 %v707, %v709
    %v711 = vadd.f32 %v707, %v710
    %vm712 = vweird.f32 %v703
    %vm713 = vweird.f32 %v707
    %vm714 = vmor %vm712, %vm713
    %v715 = vsel %vm714, %v707, %v711
    %v716 = vand.u32 2147483647, %v703
    %vm717 = vcmp.eq.f32.partialorder %v716, 8.507059e+37
    %v718 = vand.u32 %v703, 2147483648
    %v719 = vor.u32 1.1754944e-38, %v718
    %v720 = vsel %vm717, %v719, %v715
    %v721 = vmul.f32 %v698, %v720
    %v722 = vrcp.pop %v706
    %v723 = vmul.f32 %v706, %v722
    %v724 = vsub.f32 1.0, %v723
    %v725 = vmul.f32 %v722, %v724
    %v726 = vadd.f32 %v722, %v725
    %vm727 = vweird.f32 %v706
    %vm728 = vweird.f32 %v722
    %vm729 = vmor %vm727, %vm728
    %v730 = vsel %vm729, %v722, %v726
    %v731 = vand.u32 2147483647, %v706
    %vm732 = vcmp.eq.f32.partialorder %v731, 8.507059e+37
    %v733 = vand.u32 %v706, 2147483648
    %v734 = vor.u32 1.1754944e-38, %v733
    %v735 = vsel %vm732, %v734, %v730
    %v736 = vmul.f32 %v700, %v735
    %739 = vrot.lane.b32.xlu0 %v457, 112
    %v740 = vpop.permute.xlu0 %739
    %741 = vrot.lane.b32.xlu0 %v460, 112
    %v742 = vpop.permute.xlu0 %741
    %v746 = vsel %vm468, %v721, 0
    %748 = vmatpush.msra.mxu0 0.0
    %749 = vmatpush.msra.mxu0 0.0
    %750 = vmatpush.msra.mxu0 0.0
    %751 = vmatpush.msra.mxu0 0.0
    %752 = vmatpush.msra.mxu0 0.0
    %753 = vmatpush.msra.mxu0 0.0
    %754 = vmatpush.msra.mxu0 0.0
    %755 = vmatpush.msra.mxu0 0.0
    %756 = vmatpush.msra.mxu0 0.0
    %757 = vmatpush.msra.mxu0 0.0
    %758 = vmatpush.msra.mxu0 0.0
    %759 = vmatpush.msra.mxu0 0.0
    %760 = vmatpush.msra.mxu0 0.0
    %761 = vmatpush.msra.mxu0 0.0
    %762 = vmatpush.msra.mxu0 %v742
    %763 = vmatpush.msra.mxu0 %v740
    %764 = vmatmul.f32.gmra.mxu0 %v746
    %v765 = vpop.f32.mrf.mxu0
    %v766 = vadd.f32 0.0, %v765
    %767 = vdwg.mxu0
    %770 = vrot.lane.b32.xlu0 %v463, 112
    %v771 = vpop.permute.xlu0 %770
    %772 = vrot.lane.b32.xlu0 %v466, 112
    %v773 = vpop.permute.xlu0 %772
    %v777 = vsel %vm468, %v736, 0
    %779 = vmatpush.msra.mxu0 0.0
    %780 = vmatpush.msra.mxu0 0.0
    %781 = vmatpush.msra.mxu0 0.0
    %782 = vmatpush.msra.mxu0 0.0
    %783 = vmatpush.msra.mxu0 0.0
    %784 = vmatpush.msra.mxu0 0.0
    %785 = vmatpush.msra.mxu0 0.0
    %786 = vmatpush.msra.mxu0 0.0
    %787 = vmatpush.msra.mxu0 0.0
    %788 = vmatpush.msra.mxu0 0.0
    %789 = vmatpush.msra.mxu0 0.0
    %790 = vmatpush.msra.mxu0 0.0
    %791 = vmatpush.msra.mxu0 0.0
    %792 = vmatpush.msra.mxu0 0.0
    %793 = vmatpush.msra.mxu0 %v773
    %794 = vmatpush.msra.mxu0 %v771
    %795 = vmatmul.f32.gmra.mxu0 %v777
    %v796 = vpop.f32.mrf.mxu0
    %v797 = vadd.f32 0.0, %v796
    %798 = vdwg.mxu0
    %799 = vrot.lane.b32.xlu0 %v365, 96
    %v800 = vpop.permute.xlu0 %799
    %801 = vrot.lane.b32.xlu0 %v408, 96
    %v802 = vpop.permute.xlu0 %801
    %803 = vrot.lane.b32.xlu0 %v411, 96
    %v804 = vpop.permute.xlu0 %803
    %v805 = vsel %vm468, %v800, 0
    %v807 = vsel %vm468, %v802, 0
    %v809 = vsel %vm468, %v804, 0
    %811 = vmatpush.xpose.msra.mxu0 0.0
    %812 = vmatpush.xpose.msra.mxu0 0.0
    %813 = vmatpush.xpose.msra.mxu0 0.0
    %814 = vmatpush.xpose.msra.mxu0 0.0
    %815 = vmatpush.xpose.msra.mxu0 0.0
    %816 = vmatpush.xpose.msra.mxu0 0.0
    %817 = vmatpush.xpose.msra.mxu0 0.0
    %818 = vmatpush.xpose.msra.mxu0 0.0
    %819 = vmatpush.xpose.msra.mxu0 0.0
    %820 = vmatpush.xpose.msra.mxu0 0.0
    %821 = vmatpush.xpose.msra.mxu0 0.0
    %822 = vmatpush.xpose.msra.mxu0 0.0
    %823 = vmatpush.xpose.msra.mxu0 0.0
    %824 = vmatpush.xpose.msra.mxu0 0.0
    %825 = vmatpush.xpose.msra.mxu0 %v809
    %826 = vmatpush.xpose.msra.mxu0 %v807
    %827 = vmatmul.f32.gmra.mxu0 %v805
    %v828 = vpop.f32.mrf.mxu0
    %v829 = vadd.f32 0.0, %v828
    %830 = vdwg.mxu0
    %831 = vrot.lane.b32.xlu0 %v368, 96
    %v832 = vpop.permute.xlu0 %831
    %833 = vrot.lane.b32.xlu0 %v414, 96
    %v834 = vpop.permute.xlu0 %833
    %835 = vrot.lane.b32.xlu0 %v417, 96
    %v836 = vpop.permute.xlu0 %835
    %v837 = vsel %vm468, %v832, 0
    %v839 = vsel %vm468, %v834, 0
    %v841 = vsel %vm468, %v836, 0
    %843 = vmatpush.xpose.msra.mxu0 0.0
    %844 = vmatpush.xpose.msra.mxu0 0.0
    %845 = vmatpush.xpose.msra.mxu0 0.0
    %846 = vmatpush.xpose.msra.mxu0 0.0
    %847 = vmatpush.xpose.msra.mxu0 0.0
    %848 = vmatpush.xpose.msra.mxu0 0.0
    %849 = vmatpush.xpose.msra.mxu0 0.0
    %850 = vmatpush.xpose.msra.mxu0 0.0
    %851 = vmatpush.xpose.msra.mxu0 0.0
    %852 = vmatpush.xpose.msra.mxu0 0.0
    %853 = vmatpush.xpose.msra.mxu0 0.0
    %854 = vmatpush.xpose.msra.mxu0 0.0
    %855 = vmatpush.xpose.msra.mxu0 0.0
    %856 = vmatpush.xpose.msra.mxu0 0.0
    %857 = vmatpush.xpose.msra.mxu0 %v841
    %858 = vmatpush.xpose.msra.mxu0 %v839
    %859 = vmatmul.f32.gmra.mxu0 %v837
    %v860 = vpop.f32.mrf.mxu0
    %v861 = vadd.f32 0.0, %v860
    %862 = vdwg.mxu0
    %v863 = vmul.f32 %v829, 0.25
    %v864 = vmul.f32 %v861, 0.25
    %v865 = vsel %vm468, %v863, -inf
    %866 = vmax.xlane.f32.xlu0 %v865
    %v867 = vpop.xlane.xlu0 %866
    %v868 = vsel %vm468, %v864, -inf
    %869 = vmax.xlane.f32.xlu0 %v868
    %v870 = vpop.xlane.xlu0 %869
    %v871 = vsub.f32 %v863, %v867
    %v872 = vsub.f32 %v864, %v870
    %v873 = vmul.f32 %v871, 1.442695
    %v874 = vpow.pop %v873
    %v875 = vmul.f32 %v872, 1.442695
    %v876 = vpow.pop %v875
    %v877 = vsel %vm468, %v874, 0.0
    %878 = vadd.xlane.f32.xlu0 %v877
    %v879 = vpop.xlane.xlu0 %878
    %v880 = vsel %vm468, %v876, 0.0
    %881 = vadd.xlane.f32.xlu0 %v880
    %v882 = vpop.xlane.xlu0 %881
    %v883 = vrcp.pop %v879
    %v884 = vmul.f32 %v879, %v883
    %v885 = vsub.f32 1.0, %v884
    %v886 = vmul.f32 %v883, %v885
    %v887 = vadd.f32 %v883, %v886
    %vm888 = vweird.f32 %v879
    %vm889 = vweird.f32 %v883
    %vm890 = vmor %vm888, %vm889
    %v891 = vsel %vm890, %v883, %v887
    %v892 = vand.u32 2147483647, %v879
    %vm893 = vcmp.eq.f32.partialorder %v892, 8.507059e+37
    %v894 = vand.u32 %v879, 2147483648
    %v895 = vor.u32 1.1754944e-38, %v894
    %v896 = vsel %vm893, %v895, %v891
    %v897 = vmul.f32 %v874, %v896
    %v898 = vrcp.pop %v882
    %v899 = vmul.f32 %v882, %v898
    %v900 = vsub.f32 1.0, %v899
    %v901 = vmul.f32 %v898, %v900
    %v902 = vadd.f32 %v898, %v901
    %vm903 = vweird.f32 %v882
    %vm904 = vweird.f32 %v898
    %vm905 = vmor %vm903, %vm904
    %v906 = vsel %vm905, %v898, %v902
    %v907 = vand.u32 2147483647, %v882
    %vm908 = vcmp.eq.f32.partialorder %v907, 8.507059e+37
    %v909 = vand.u32 %v882, 2147483648
    %v910 = vor.u32 1.1754944e-38, %v909
    %v911 = vsel %vm908, %v910, %v906
    %v912 = vmul.f32 %v876, %v911
    %913 = vrot.lane.b32.xlu0 %v457, 96
    %v914 = vpop.permute.xlu0 %913
    %915 = vrot.lane.b32.xlu0 %v460, 96
    %v916 = vpop.permute.xlu0 %915
    %v920 = vsel %vm468, %v897, 0
    %922 = vmatpush.msra.mxu0 0.0
    %923 = vmatpush.msra.mxu0 0.0
    %924 = vmatpush.msra.mxu0 0.0
    %925 = vmatpush.msra.mxu0 0.0
    %926 = vmatpush.msra.mxu0 0.0
    %927 = vmatpush.msra.mxu0 0.0
    %928 = vmatpush.msra.mxu0 0.0
    %929 = vmatpush.msra.mxu0 0.0
    %930 = vmatpush.msra.mxu0 0.0
    %931 = vmatpush.msra.mxu0 0.0
    %932 = vmatpush.msra.mxu0 0.0
    %933 = vmatpush.msra.mxu0 0.0
    %934 = vmatpush.msra.mxu0 0.0
    %935 = vmatpush.msra.mxu0 0.0
    %936 = vmatpush.msra.mxu0 %v916
    %937 = vmatpush.msra.mxu0 %v914
    %938 = vmatmul.f32.gmra.mxu0 %v920
    %v939 = vpop.f32.mrf.mxu0
    %v940 = vadd.f32 0.0, %v939
    %941 = vdwg.mxu0
    %942 = vrot.lane.b32.xlu0 %v463, 96
    %v943 = vpop.permute.xlu0 %942
    %944 = vrot.lane.b32.xlu0 %v466, 96
    %v945 = vpop.permute.xlu0 %944
    %v949 = vsel %vm468, %v912, 0
    %951 = vmatpush.msra.mxu0 0.0
    %952 = vmatpush.msra.mxu0 0.0
    %953 = vmatpush.msra.mxu0 0.0
    %954 = vmatpush.msra.mxu0 0.0
    %955 = vmatpush.msra.mxu0 0.0
    %956 = vmatpush.msra.mxu0 0.0
    %957 = vmatpush.msra.mxu0 0.0
    %958 = vmatpush.msra.mxu0 0.0
    %959 = vmatpush.msra.mxu0 0.0
    %960 = vmatpush.msra.mxu0 0.0
    %961 = vmatpush.msra.mxu0 0.0
    %962 = vmatpush.msra.mxu0 0.0
    %963 = vmatpush.msra.mxu0 0.0
    %964 = vmatpush.msra.mxu0 0.0
    %965 = vmatpush.msra.mxu0 %v945
    %966 = vmatpush.msra.mxu0 %v943
    %967 = vmatmul.f32.gmra.mxu0 %v949
    %v968 = vpop.f32.mrf.mxu0
    %v969 = vadd.f32 0.0, %v968
    %970 = vdwg.mxu0
    %971 = vrot.lane.b32.xlu0 %v365, 80
    %v972 = vpop.permute.xlu0 %971
    %973 = vrot.lane.b32.xlu0 %v408, 80
    %v974 = vpop.permute.xlu0 %973
    %975 = vrot.lane.b32.xlu0 %v411, 80
    %v976 = vpop.permute.xlu0 %975
    %v977 = vsel %vm468, %v972, 0
    %v979 = vsel %vm468, %v974, 0
    %v981 = vsel %vm468, %v976, 0
    %983 = vmatpush.xpose.msra.mxu0 0.0
    %984 = vmatpush.xpose.msra.mxu0 0.0
    %985 = vmatpush.xpose.msra.mxu0 0.0
    %986 = vmatpush.xpose.msra.mxu0 0.0
    %987 = vmatpush.xpose.msra.mxu0 0.0
    %988 = vmatpush.xpose.msra.mxu0 0.0
    %989 = vmatpush.xpose.msra.mxu0 0.0
    %990 = vmatpush.xpose.msra.mxu0 0.0
    %991 = vmatpush.xpose.msra.mxu0 0.0
    %992 = vmatpush.xpose.msra.mxu0 0.0
    %993 = vmatpush.xpose.msra.mxu0 0.0
    %994 = vmatpush.xpose.msra.mxu0 0.0
    %995 = vmatpush.xpose.msra.mxu0 0.0
    %996 = vmatpush.xpose.msra.mxu0 0.0
    %997 = vmatpush.xpose.msra.mxu0 %v981
    %998 = vmatpush.xpose.msra.mxu0 %v979
    %999 = vmatmul.f32.gmra.mxu0 %v977
    %v1000 = vpop.f32.mrf.mxu0
    %v1001 = vadd.f32 0.0, %v1000
    %1002 = vdwg.mxu0
    %1003 = vrot.lane.b32.xlu0 %v368, 80
    %v1004 = vpop.permute.xlu0 %1003
    %1005 = vrot.lane.b32.xlu0 %v414, 80
    %v1006 = vpop.permute.xlu0 %1005
    %1007 = vrot.lane.b32.xlu0 %v417, 80
    %v1008 = vpop.permute.xlu0 %1007
    %v1009 = vsel %vm468, %v1004, 0
    %v1011 = vsel %vm468, %v1006, 0
    %v1013 = vsel %vm468, %v1008, 0
    %1015 = vmatpush.xpose.msra.mxu0 0.0
    %1016 = vmatpush.xpose.msra.mxu0 0.0
    %1017 = vmatpush.xpose.msra.mxu0 0.0
    %1018 = vmatpush.xpose.msra.mxu0 0.0
    %1019 = vmatpush.xpose.msra.mxu0 0.0
    %1020 = vmatpush.xpose.msra.mxu0 0.0
    %1021 = vmatpush.xpose.msra.mxu0 0.0
    %1022 = vmatpush.xpose.msra.mxu0 0.0
    %1023 = vmatpush.xpose.msra.mxu0 0.0
    %1024 = vmatpush.xpose.msra.mxu0 0.0
    %1025 = vmatpush.xpose.msra.mxu0 0.0
    %1026 = vmatpush.xpose.msra.mxu0 0.0
    %1027 = vmatpush.xpose.msra.mxu0 0.0
    %1028 = vmatpush.xpose.msra.mxu0 0.0
    %1029 = vmatpush.xpose.msra.mxu0 %v1013
    %1030 = vmatpush.xpose.msra.mxu0 %v1011
    %1031 = vmatmul.f32.gmra.mxu0 %v1009
    %v1032 = vpop.f32.mrf.mxu0
    %v1033 = vadd.f32 0.0, %v1032
    %1034 = vdwg.mxu0
    %v1035 = vmul.f32 %v1001, 0.25
    %v1036 = vmul.f32 %v1033, 0.25
    %v1037 = vsel %vm468, %v1035, -inf
    %1038 = vmax.xlane.f32.xlu0 %v1037
    %v1039 = vpop.xlane.xlu0 %1038
    %v1040 = vsel %vm468, %v1036, -inf
    %1041 = vmax.xlane.f32.xlu0 %v1040
    %v1042 = vpop.xlane.xlu0 %1041
    %v1043 = vsub.f32 %v1035, %v1039
    %v1044 = vsub.f32 %v1036, %v1042
    %v1045 = vmul.f32 %v1043, 1.442695
    %v1046 = vpow.pop %v1045
    %v1047 = vmul.f32 %v1044, 1.442695
    %v1048 = vpow.pop %v1047
    %v1049 = vsel %vm468, %v1046, 0.0
    %1050 = vadd.xlane.f32.xlu0 %v1049
    %v1051 = vpop.xlane.xlu0 %1050
    %v1052 = vsel %vm468, %v1048, 0.0
    %1053 = vadd.xlane.f32.xlu0 %v1052
    %v1054 = vpop.xlane.xlu0 %1053
    %v1055 = vrcp.pop %v1051
    %v1056 = vmul.f32 %v1051, %v1055
    %v1057 = vsub.f32 1.0, %v1056
    %v1058 = vmul.f32 %v1055, %v1057
    %v1059 = vadd.f32 %v1055, %v1058
    %vm1060 = vweird.f32 %v1051
    %vm1061 = vweird.f32 %v1055
    %vm1062 = vmor %vm1060, %vm1061
    %v1063 = vsel %vm1062, %v1055, %v1059
    %v1064 = vand.u32 2147483647, %v1051
    %vm1065 = vcmp.eq.f32.partialorder %v1064, 8.507059e+37
    %v1066 = vand.u32 %v1051, 2147483648
    %v1067 = vor.u32 1.1754944e-38, %v1066
    %v1068 = vsel %vm1065, %v1067, %v1063
    %v1069 = vmul.f32 %v1046, %v1068
    %v1070 = vrcp.pop %v1054
    %v1071 = vmul.f32 %v1054, %v1070
    %v1072 = vsub.f32 1.0, %v1071
    %v1073 = vmul.f32 %v1070, %v1072
    %v1074 = vadd.f32 %v1070, %v1073
    %vm1075 = vweird.f32 %v1054
    %vm1076 = vweird.f32 %v1070
    %vm1077 = vmor %vm1075, %vm1076
    %v1078 = vsel %vm1077, %v1070, %v1074
    %v1079 = vand.u32 2147483647, %v1054
    %vm1080 = vcmp.eq.f32.partialorder %v1079, 8.507059e+37
    %v1081 = vand.u32 %v1054, 2147483648
    %v1082 = vor.u32 1.1754944e-38, %v1081
    %v1083 = vsel %vm1080, %v1082, %v1078
    %v1084 = vmul.f32 %v1048, %v1083
    %1085 = vrot.lane.b32.xlu0 %v457, 80
    %v1086 = vpop.permute.xlu0 %1085
    %1087 = vrot.lane.b32.xlu0 %v460, 80
    %v1088 = vpop.permute.xlu0 %1087
    %v1092 = vsel %vm468, %v1069, 0
    %1094 = vmatpush.msra.mxu0 0.0
    %1095 = vmatpush.msra.mxu0 0.0
    %1096 = vmatpush.msra.mxu0 0.0
    %1097 = vmatpush.msra.mxu0 0.0
    %1098 = vmatpush.msra.mxu0 0.0
    %1099 = vmatpush.msra.mxu0 0.0
    %1100 = vmatpush.msra.mxu0 0.0
    %1101 = vmatpush.msra.mxu0 0.0
    %1102 = vmatpush.msra.mxu0 0.0
    %1103 = vmatpush.msra.mxu0 0.0
    %1104 = vmatpush.msra.mxu0 0.0
    %1105 = vmatpush.msra.mxu0 0.0
    %1106 = vmatpush.msra.mxu0 0.0
    %1107 = vmatpush.msra.mxu0 0.0
    %1108 = vmatpush.msra.mxu0 %v1088
    %1109 = vmatpush.msra.mxu0 %v1086
    %1110 = vmatmul.f32.gmra.mxu0 %v1092
    %v1111 = vpop.f32.mrf.mxu0
    %v1112 = vadd.f32 0.0, %v1111
    %1113 = vdwg.mxu0
    %1114 = vrot.lane.b32.xlu0 %v463, 80
    %v1115 = vpop.permute.xlu0 %1114
    %1116 = vrot.lane.b32.xlu0 %v466, 80
    %v1117 = vpop.permute.xlu0 %1116
    %v1121 = vsel %vm468, %v1084, 0
    %1123 = vmatpush.msra.mxu0 0.0
    %1124 = vmatpush.msra.mxu0 0.0
    %1125 = vmatpush.msra.mxu0 0.0
    %1126 = vmatpush.msra.mxu0 0.0
    %1127 = vmatpush.msra.mxu0 0.0
    %1128 = vmatpush.msra.mxu0 0.0
    %1129 = vmatpush.msra.mxu0 0.0
    %1130 = vmatpush.msra.mxu0 0.0
    %1131 = vmatpush.msra.mxu0 0.0
    %1132 = vmatpush.msra.mxu0 0.0
    %1133 = vmatpush.msra.mxu0 0.0
    %1134 = vmatpush.msra.mxu0 0.0
    %1135 = vmatpush.msra.mxu0 0.0
    %1136 = vmatpush.msra.mxu0 0.0
    %1137 = vmatpush.msra.mxu0 %v1117
    %1138 = vmatpush.msra.mxu0 %v1115
    %1139 = vmatmul.f32.gmra.mxu0 %v1121
    %v1140 = vpop.f32.mrf.mxu0
    %v1141 = vadd.f32 0.0, %v1140
    %1142 = vdwg.mxu0
    %1143 = vrot.lane.b32.xlu0 %v365, 64
    %v1144 = vpop.permute.xlu0 %1143
    %1145 = vrot.lane.b32.xlu0 %v408, 64
    %v1146 = vpop.permute.xlu0 %1145
    %1147 = vrot.lane.b32.xlu0 %v411, 64
    %v1148 = vpop.permute.xlu0 %1147
    %v1149 = vsel %vm468, %v1144, 0
    %v1151 = vsel %vm468, %v1146, 0
    %v1153 = vsel %vm468, %v1148, 0
    %1155 = vmatpush.xpose.msra.mxu0 0.0
    %1156 = vmatpush.xpose.msra.mxu0 0.0
    %1157 = vmatpush.xpose.msra.mxu0 0.0
    %1158 = vmatpush.xpose.msra.mxu0 0.0
    %1159 = vmatpush.xpose.msra.mxu0 0.0
    %1160 = vmatpush.xpose.msra.mxu0 0.0
    %1161 = vmatpush.xpose.msra.mxu0 0.0
    %1162 = vmatpush.xpose.msra.mxu0 0.0
    %1163 = vmatpush.xpose.msra.mxu0 0.0
    %1164 = vmatpush.xpose.msra.mxu0 0.0
    %1165 = vmatpush.xpose.msra.mxu0 0.0
    %1166 = vmatpush.xpose.msra.mxu0 0.0
    %1167 = vmatpush.xpose.msra.mxu0 0.0
    %1168 = vmatpush.xpose.msra.mxu0 0.0
    %1169 = vmatpush.xpose.msra.mxu0 %v1153
    %1170 = vmatpush.xpose.msra.mxu0 %v1151
    %1171 = vmatmul.f32.gmra.mxu0 %v1149
    %v1172 = vpop.f32.mrf.mxu0
    %v1173 = vadd.f32 0.0, %v1172
    %1174 = vdwg.mxu0
    %1175 = vrot.lane.b32.xlu0 %v368, 64
    %v1176 = vpop.permute.xlu0 %1175
    %1177 = vrot.lane.b32.xlu0 %v414, 64
    %v1178 = vpop.permute.xlu0 %1177
    %1179 = vrot.lane.b32.xlu0 %v417, 64
    %v1180 = vpop.permute.xlu0 %1179
    %v1181 = vsel %vm468, %v1176, 0
    %v1183 = vsel %vm468, %v1178, 0
    %v1185 = vsel %vm468, %v1180, 0
    %1187 = vmatpush.xpose.msra.mxu0 0.0
    %1188 = vmatpush.xpose.msra.mxu0 0.0
    %1189 = vmatpush.xpose.msra.mxu0 0.0
    %1190 = vmatpush.xpose.msra.mxu0 0.0
    %1191 = vmatpush.xpose.msra.mxu0 0.0
    %1192 = vmatpush.xpose.msra.mxu0 0.0
    %1193 = vmatpush.xpose.msra.mxu0 0.0
    %1194 = vmatpush.xpose.msra.mxu0 0.0
    %1195 = vmatpush.xpose.msra.mxu0 0.0
    %1196 = vmatpush.xpose.msra.mxu0 0.0
    %1197 = vmatpush.xpose.msra.mxu0 0.0
    %1198 = vmatpush.xpose.msra.mxu0 0.0
    %1199 = vmatpush.xpose.msra.mxu0 0.0
    %1200 = vmatpush.xpose.msra.mxu0 0.0
    %1201 = vmatpush.xpose.msra.mxu0 %v1185
    %1202 = vmatpush.xpose.msra.mxu0 %v1183
    %1203 = vmatmul.f32.gmra.mxu0 %v1181
    %v1204 = vpop.f32.mrf.mxu0
    %v1205 = vadd.f32 0.0, %v1204
    %1206 = vdwg.mxu0
    %v1207 = vmul.f32 %v1173, 0.25
    %v1208 = vmul.f32 %v1205, 0.25
    %v1209 = vsel %vm468, %v1207, -inf
    %1210 = vmax.xlane.f32.xlu0 %v1209
    %v1211 = vpop.xlane.xlu0 %1210
    %v1212 = vsel %vm468, %v1208, -inf
    %1213 = vmax.xlane.f32.xlu0 %v1212
    %v1214 = vpop.xlane.xlu0 %1213
    %v1215 = vsub.f32 %v1207, %v1211
    %v1216 = vsub.f32 %v1208, %v1214
    %v1217 = vmul.f32 %v1215, 1.442695
    %v1218 = vpow.pop %v1217
    %v1219 = vmul.f32 %v1216, 1.442695
    %v1220 = vpow.pop %v1219
    %v1221 = vsel %vm468, %v1218, 0.0
    %1222 = vadd.xlane.f32.xlu0 %v1221
    %v1223 = vpop.xlane.xlu0 %1222
    %v1224 = vsel %vm468, %v1220, 0.0
    %1225 = vadd.xlane.f32.xlu0 %v1224
    %v1226 = vpop.xlane.xlu0 %1225
    %v1227 = vrcp.pop %v1223
    %v1228 = vmul.f32 %v1223, %v1227
    %v1229 = vsub.f32 1.0, %v1228
    %v1230 = vmul.f32 %v1227, %v1229
    %v1231 = vadd.f32 %v1227, %v1230
    %vm1232 = vweird.f32 %v1223
    %vm1233 = vweird.f32 %v1227
    %vm1234 = vmor %vm1232, %vm1233
    %v1235 = vsel %vm1234, %v1227, %v1231
    %v1236 = vand.u32 2147483647, %v1223
    %vm1237 = vcmp.eq.f32.partialorder %v1236, 8.507059e+37
    %v1238 = vand.u32 %v1223, 2147483648
    %v1239 = vor.u32 1.1754944e-38, %v1238
    %v1240 = vsel %vm1237, %v1239, %v1235
    %v1241 = vmul.f32 %v1218, %v1240
    %v1242 = vrcp.pop %v1226
    %v1243 = vmul.f32 %v1226, %v1242
    %v1244 = vsub.f32 1.0, %v1243
    %v1245 = vmul.f32 %v1242, %v1244
    %v1246 = vadd.f32 %v1242, %v1245
    %vm1247 = vweird.f32 %v1226
    %vm1248 = vweird.f32 %v1242
    %vm1249 = vmor %vm1247, %vm1248
    %v1250 = vsel %vm1249, %v1242, %v1246
    %v1251 = vand.u32 2147483647, %v1226
    %vm1252 = vcmp.eq.f32.partialorder %v1251, 8.507059e+37
    %v1253 = vand.u32 %v1226, 2147483648
    %v1254 = vor.u32 1.1754944e-38, %v1253
    %v1255 = vsel %vm1252, %v1254, %v1250
    %v1256 = vmul.f32 %v1220, %v1255
    %1257 = vrot.lane.b32.xlu0 %v457, 64
    %v1258 = vpop.permute.xlu0 %1257
    %1259 = vrot.lane.b32.xlu0 %v460, 64
    %v1260 = vpop.permute.xlu0 %1259
    %v1264 = vsel %vm468, %v1241, 0
    %1266 = vmatpush.msra.mxu0 0.0
    %1267 = vmatpush.msra.mxu0 0.0
    %1268 = vmatpush.msra.mxu0 0.0
    %1269 = vmatpush.msra.mxu0 0.0
    %1270 = vmatpush.msra.mxu0 0.0
    %1271 = vmatpush.msra.mxu0 0.0
    %1272 = vmatpush.msra.mxu0 0.0
    %1273 = vmatpush.msra.mxu0 0.0
    %1274 = vmatpush.msra.mxu0 0.0
    %1275 = vmatpush.msra.mxu0 0.0
    %1276 = vmatpush.msra.mxu0 0.0
    %1277 = vmatpush.msra.mxu0 0.0
    %1278 = vmatpush.msra.mxu0 0.0
    %1279 = vmatpush.msra.mxu0 0.0
    %1280 = vmatpush.msra.mxu0 %v1260
    %1281 = vmatpush.msra.mxu0 %v1258
    %1282 = vmatmul.f32.gmra.mxu0 %v1264
    %v1283 = vpop.f32.mrf.mxu0
    %v1284 = vadd.f32 0.0, %v1283
    %1285 = vdwg.mxu0
    %1286 = vrot.lane.b32.xlu0 %v463, 64
    %v1287 = vpop.permute.xlu0 %1286
    %1288 = vrot.lane.b32.xlu0 %v466, 64
    %v1289 = vpop.permute.xlu0 %1288
    %v1293 = vsel %vm468, %v1256, 0
    %1295 = vmatpush.msra.mxu0 0.0
    %1296 = vmatpush.msra.mxu0 0.0
    %1297 = vmatpush.msra.mxu0 0.0
    %1298 = vmatpush.msra.mxu0 0.0
    %1299 = vmatpush.msra.mxu0 0.0
    %1300 = vmatpush.msra.mxu0 0.0
    %1301 = vmatpush.msra.mxu0 0.0
    %1302 = vmatpush.msra.mxu0 0.0
    %1303 = vmatpush.msra.mxu0 0.0
    %1304 = vmatpush.msra.mxu0 0.0
    %1305 = vmatpush.msra.mxu0 0.0
    %1306 = vmatpush.msra.mxu0 0.0
    %1307 = vmatpush.msra.mxu0 0.0
    %1308 = vmatpush.msra.mxu0 0.0
    %1309 = vmatpush.msra.mxu0 %v1289
    %1310 = vmatpush.msra.mxu0 %v1287
    %1311 = vmatmul.f32.gmra.mxu0 %v1293
    %v1312 = vpop.f32.mrf.mxu0
    %v1313 = vadd.f32 0.0, %v1312
    %1314 = vdwg.mxu0
    %1315 = vrot.lane.b32.xlu0 %v365, 48
    %v1316 = vpop.permute.xlu0 %1315
    %1317 = vrot.lane.b32.xlu0 %v408, 48
    %v1318 = vpop.permute.xlu0 %1317
    %1319 = vrot.lane.b32.xlu0 %v411, 48
    %v1320 = vpop.permute.xlu0 %1319
    %v1321 = vsel %vm468, %v1316, 0
    %v1323 = vsel %vm468, %v1318, 0
    %v1325 = vsel %vm468, %v1320, 0
    %1327 = vmatpush.xpose.msra.mxu0 0.0
    %1328 = vmatpush.xpose.msra.mxu0 0.0
    %1329 = vmatpush.xpose.msra.mxu0 0.0
    %1330 = vmatpush.xpose.msra.mxu0 0.0
    %1331 = vmatpush.xpose.msra.mxu0 0.0
    %1332 = vmatpush.xpose.msra.mxu0 0.0
    %1333 = vmatpush.xpose.msra.mxu0 0.0
    %1334 = vmatpush.xpose.msra.mxu0 0.0
    %1335 = vmatpush.xpose.msra.mxu0 0.0
    %1336 = vmatpush.xpose.msra.mxu0 0.0
    %1337 = vmatpush.xpose.msra.mxu0 0.0
    %1338 = vmatpush.xpose.msra.mxu0 0.0
    %1339 = vmatpush.xpose.msra.mxu0 0.0
    %1340 = vmatpush.xpose.msra.mxu0 0.0
    %1341 = vmatpush.xpose.msra.mxu0 %v1325
    %1342 = vmatpush.xpose.msra.mxu0 %v1323
    %1343 = vmatmul.f32.gmra.mxu0 %v1321
    %v1344 = vpop.f32.mrf.mxu0
    %v1345 = vadd.f32 0.0, %v1344
    %1346 = vdwg.mxu0
    %1347 = vrot.lane.b32.xlu0 %v368, 48
    %v1348 = vpop.permute.xlu0 %1347
    %1349 = vrot.lane.b32.xlu0 %v414, 48
    %v1350 = vpop.permute.xlu0 %1349
    %1351 = vrot.lane.b32.xlu0 %v417, 48
    %v1352 = vpop.permute.xlu0 %1351
    %v1353 = vsel %vm468, %v1348, 0
    %v1355 = vsel %vm468, %v1350, 0
    %v1357 = vsel %vm468, %v1352, 0
    %1359 = vmatpush.xpose.msra.mxu0 0.0
    %1360 = vmatpush.xpose.msra.mxu0 0.0
    %1361 = vmatpush.xpose.msra.mxu0 0.0
    %1362 = vmatpush.xpose.msra.mxu0 0.0
    %1363 = vmatpush.xpose.msra.mxu0 0.0
    %1364 = vmatpush.xpose.msra.mxu0 0.0
    %1365 = vmatpush.xpose.msra.mxu0 0.0
    %1366 = vmatpush.xpose.msra.mxu0 0.0
    %1367 = vmatpush.xpose.msra.mxu0 0.0
    %1368 = vmatpush.xpose.msra.mxu0 0.0
    %1369 = vmatpush.xpose.msra.mxu0 0.0
    %1370 = vmatpush.xpose.msra.mxu0 0.0
    %1371 = vmatpush.xpose.msra.mxu0 0.0
    %1372 = vmatpush.xpose.msra.mxu0 0.0
    %1373 = vmatpush.xpose.msra.mxu0 %v1357
    %1374 = vmatpush.xpose.msra.mxu0 %v1355
    %1375 = vmatmul.f32.gmra.mxu0 %v1353
    %v1376 = vpop.f32.mrf.mxu0
    %v1377 = vadd.f32 0.0, %v1376
    %1378 = vdwg.mxu0
    %v1379 = vmul.f32 %v1345, 0.25
    %v1380 = vmul.f32 %v1377, 0.25
    %v1381 = vsel %vm468, %v1379, -inf
    %1382 = vmax.xlane.f32.xlu0 %v1381
    %v1383 = vpop.xlane.xlu0 %1382
    %v1384 = vsel %vm468, %v1380, -inf
    %1385 = vmax.xlane.f32.xlu0 %v1384
    %v1386 = vpop.xlane.xlu0 %1385
    %v1387 = vsub.f32 %v1379, %v1383
    %v1388 = vsub.f32 %v1380, %v1386
    %v1389 = vmul.f32 %v1387, 1.442695
    %v1390 = vpow.pop %v1389
    %v1391 = vmul.f32 %v1388, 1.442695
    %v1392 = vpow.pop %v1391
    %v1393 = vsel %vm468, %v1390, 0.0
    %1394 = vadd.xlane.f32.xlu0 %v1393
    %v1395 = vpop.xlane.xlu0 %1394
    %v1396 = vsel %vm468, %v1392, 0.0
    %1397 = vadd.xlane.f32.xlu0 %v1396
    %v1398 = vpop.xlane.xlu0 %1397
    %v1399 = vrcp.pop %v1395
    %v1400 = vmul.f32 %v1395, %v1399
    %v1401 = vsub.f32 1.0, %v1400
    %v1402 = vmul.f32 %v1399, %v1401
    %v1403 = vadd.f32 %v1399, %v1402
    %vm1404 = vweird.f32 %v1395
    %vm1405 = vweird.f32 %v1399
    %vm1406 = vmor %vm1404, %vm1405
    %v1407 = vsel %vm1406, %v1399, %v1403
    %v1408 = vand.u32 2147483647, %v1395
    %vm1409 = vcmp.eq.f32.partialorder %v1408, 8.507059e+37
    %v1410 = vand.u32 %v1395, 2147483648
    %v1411 = vor.u32 1.1754944e-38, %v1410
    %v1412 = vsel %vm1409, %v1411, %v1407
    %v1413 = vmul.f32 %v1390, %v1412
    %v1414 = vrcp.pop %v1398
    %v1415 = vmul.f32 %v1398, %v1414
    %v1416 = vsub.f32 1.0, %v1415
    %v1417 = vmul.f32 %v1414, %v1416
    %v1418 = vadd.f32 %v1414, %v1417
    %vm1419 = vweird.f32 %v1398
    %vm1420 = vweird.f32 %v1414
    %vm1421 = vmor %vm1419, %vm1420
    %v1422 = vsel %vm1421, %v1414, %v1418
    %v1423 = vand.u32 2147483647, %v1398
    %vm1424 = vcmp.eq.f32.partialorder %v1423, 8.507059e+37
    %v1425 = vand.u32 %v1398, 2147483648
    %v1426 = vor.u32 1.1754944e-38, %v1425
    %v1427 = vsel %vm1424, %v1426, %v1422
    %v1428 = vmul.f32 %v1392, %v1427
    %1429 = vrot.lane.b32.xlu0 %v457, 48
    %v1430 = vpop.permute.xlu0 %1429
    %1431 = vrot.lane.b32.xlu0 %v460, 48
    %v1432 = vpop.permute.xlu0 %1431
    %v1436 = vsel %vm468, %v1413, 0
    %1438 = vmatpush.msra.mxu0 0.0
    %1439 = vmatpush.msra.mxu0 0.0
    %1440 = vmatpush.msra.mxu0 0.0
    %1441 = vmatpush.msra.mxu0 0.0
    %1442 = vmatpush.msra.mxu0 0.0
    %1443 = vmatpush.msra.mxu0 0.0
    %1444 = vmatpush.msra.mxu0 0.0
    %1445 = vmatpush.msra.mxu0 0.0
    %1446 = vmatpush.msra.mxu0 0.0
    %1447 = vmatpush.msra.mxu0 0.0
    %1448 = vmatpush.msra.mxu0 0.0
    %1449 = vmatpush.msra.mxu0 0.0
    %1450 = vmatpush.msra.mxu0 0.0
    %1451 = vmatpush.msra.mxu0 0.0
    %1452 = vmatpush.msra.mxu0 %v1432
    %1453 = vmatpush.msra.mxu0 %v1430
    %1454 = vmatmul.f32.gmra.mxu0 %v1436
    %v1455 = vpop.f32.mrf.mxu0
    %v1456 = vadd.f32 0.0, %v1455
    %1457 = vdwg.mxu0
    %1458 = vrot.lane.b32.xlu0 %v463, 48
    %v1459 = vpop.permute.xlu0 %1458
    %1460 = vrot.lane.b32.xlu0 %v466, 48
    %v1461 = vpop.permute.xlu0 %1460
    %v1465 = vsel %vm468, %v1428, 0
    %1467 = vmatpush.msra.mxu0 0.0
    %1468 = vmatpush.msra.mxu0 0.0
    %1469 = vmatpush.msra.mxu0 0.0
    %1470 = vmatpush.msra.mxu0 0.0
    %1471 = vmatpush.msra.mxu0 0.0
    %1472 = vmatpush.msra.mxu0 0.0
    %1473 = vmatpush.msra.mxu0 0.0
    %1474 = vmatpush.msra.mxu0 0.0
    %1475 = vmatpush.msra.mxu0 0.0
    %1476 = vmatpush.msra.mxu0 0.0
    %1477 = vmatpush.msra.mxu0 0.0
    %1478 = vmatpush.msra.mxu0 0.0
    %1479 = vmatpush.msra.mxu0 0.0
    %1480 = vmatpush.msra.mxu0 0.0
    %1481 = vmatpush.msra.mxu0 %v1461
    %1482 = vmatpush.msra.mxu0 %v1459
    %1483 = vmatmul.f32.gmra.mxu0 %v1465
    %v1484 = vpop.f32.mrf.mxu0
    %v1485 = vadd.f32 0.0, %v1484
    %1486 = vdwg.mxu0
    %1487 = vrot.lane.b32.xlu0 %v365, 32
    %v1488 = vpop.permute.xlu0 %1487
    %1489 = vrot.lane.b32.xlu0 %v408, 32
    %v1490 = vpop.permute.xlu0 %1489
    %1491 = vrot.lane.b32.xlu0 %v411, 32
    %v1492 = vpop.permute.xlu0 %1491
    %v1493 = vsel %vm468, %v1488, 0
    %v1495 = vsel %vm468, %v1490, 0
    %v1497 = vsel %vm468, %v1492, 0
    %1499 = vmatpush.xpose.msra.mxu0 0.0
    %1500 = vmatpush.xpose.msra.mxu0 0.0
    %1501 = vmatpush.xpose.msra.mxu0 0.0
    %1502 = vmatpush.xpose.msra.mxu0 0.0
    %1503 = vmatpush.xpose.msra.mxu0 0.0
    %1504 = vmatpush.xpose.msra.mxu0 0.0
    %1505 = vmatpush.xpose.msra.mxu0 0.0
    %1506 = vmatpush.xpose.msra.mxu0 0.0
    %1507 = vmatpush.xpose.msra.mxu0 0.0
    %1508 = vmatpush.xpose.msra.mxu0 0.0
    %1509 = vmatpush.xpose.msra.mxu0 0.0
    %1510 = vmatpush.xpose.msra.mxu0 0.0
    %1511 = vmatpush.xpose.msra.mxu0 0.0
    %1512 = vmatpush.xpose.msra.mxu0 0.0
    %1513 = vmatpush.xpose.msra.mxu0 %v1497
    %1514 = vmatpush.xpose.msra.mxu0 %v1495
    %1515 = vmatmul.f32.gmra.mxu0 %v1493
    %v1516 = vpop.f32.mrf.mxu0
    %v1517 = vadd.f32 0.0, %v1516
    %1518 = vdwg.mxu0
    %1519 = vrot.lane.b32.xlu0 %v368, 32
    %v1520 = vpop.permute.xlu0 %1519
    %1521 = vrot.lane.b32.xlu0 %v414, 32
    %v1522 = vpop.permute.xlu0 %1521
    %1523 = vrot.lane.b32.xlu0 %v417, 32
    %v1524 = vpop.permute.xlu0 %1523
    %v1525 = vsel %vm468, %v1520, 0
    %v1527 = vsel %vm468, %v1522, 0
    %v1529 = vsel %vm468, %v1524, 0
    %1531 = vmatpush.xpose.msra.mxu0 0.0
    %1532 = vmatpush.xpose.msra.mxu0 0.0
    %1533 = vmatpush.xpose.msra.mxu0 0.0
    %1534 = vmatpush.xpose.msra.mxu0 0.0
    %1535 = vmatpush.xpose.msra.mxu0 0.0
    %1536 = vmatpush.xpose.msra.mxu0 0.0
    %1537 = vmatpush.xpose.msra.mxu0 0.0
    %1538 = vmatpush.xpose.msra.mxu0 0.0
    %1539 = vmatpush.xpose.msra.mxu0 0.0
    %1540 = vmatpush.xpose.msra.mxu0 0.0
    %1541 = vmatpush.xpose.msra.mxu0 0.0
    %1542 = vmatpush.xpose.msra.mxu0 0.0
    %1543 = vmatpush.xpose.msra.mxu0 0.0
    %1544 = vmatpush.xpose.msra.mxu0 0.0
    %1545 = vmatpush.xpose.msra.mxu0 %v1529
    %1546 = vmatpush.xpose.msra.mxu0 %v1527
    %1547 = vmatmul.f32.gmra.mxu0 %v1525
    %v1548 = vpop.f32.mrf.mxu0
    %v1549 = vadd.f32 0.0, %v1548
    %1550 = vdwg.mxu0
    %v1551 = vmul.f32 %v1517, 0.25
    %v1552 = vmul.f32 %v1549, 0.25
    %v1553 = vsel %vm468, %v1551, -inf
    %1554 = vmax.xlane.f32.xlu0 %v1553
    %v1555 = vpop.xlane.xlu0 %1554
    %v1556 = vsel %vm468, %v1552, -inf
    %1557 = vmax.xlane.f32.xlu0 %v1556
    %v1558 = vpop.xlane.xlu0 %1557
    %v1559 = vsub.f32 %v1551, %v1555
    %v1560 = vsub.f32 %v1552, %v1558
    %v1561 = vmul.f32 %v1559, 1.442695
    %v1562 = vpow.pop %v1561
    %v1563 = vmul.f32 %v1560, 1.442695
    %v1564 = vpow.pop %v1563
    %v1565 = vsel %vm468, %v1562, 0.0
    %1566 = vadd.xlane.f32.xlu0 %v1565
    %v1567 = vpop.xlane.xlu0 %1566
    %v1568 = vsel %vm468, %v1564, 0.0
    %1569 = vadd.xlane.f32.xlu0 %v1568
    %v1570 = vpop.xlane.xlu0 %1569
    %v1571 = vrcp.pop %v1567
    %v1572 = vmul.f32 %v1567, %v1571
    %v1573 = vsub.f32 1.0, %v1572
    %v1574 = vmul.f32 %v1571, %v1573
    %v1575 = vadd.f32 %v1571, %v1574
    %vm1576 = vweird.f32 %v1567
    %vm1577 = vweird.f32 %v1571
    %vm1578 = vmor %vm1576, %vm1577
    %v1579 = vsel %vm1578, %v1571, %v1575
    %v1580 = vand.u32 2147483647, %v1567
    %vm1581 = vcmp.eq.f32.partialorder %v1580, 8.507059e+37
    %v1582 = vand.u32 %v1567, 2147483648
    %v1583 = vor.u32 1.1754944e-38, %v1582
    %v1584 = vsel %vm1581, %v1583, %v1579
    %v1585 = vmul.f32 %v1562, %v1584
    %v1586 = vrcp.pop %v1570
    %v1587 = vmul.f32 %v1570, %v1586
    %v1588 = vsub.f32 1.0, %v1587
    %v1589 = vmul.f32 %v1586, %v1588
    %v1590 = vadd.f32 %v1586, %v1589
    %vm1591 = vweird.f32 %v1570
    %vm1592 = vweird.f32 %v1586
    %vm1593 = vmor %vm1591, %vm1592
    %v1594 = vsel %vm1593, %v1586, %v1590
    %v1595 = vand.u32 2147483647, %v1570
    %vm1596 = vcmp.eq.f32.partialorder %v1595, 8.507059e+37
    %v1597 = vand.u32 %v1570, 2147483648
    %v1598 = vor.u32 1.1754944e-38, %v1597
    %v1599 = vsel %vm1596, %v1598, %v1594
    %v1600 = vmul.f32 %v1564, %v1599
    %1601 = vrot.lane.b32.xlu0 %v457, 32
    %v1602 = vpop.permute.xlu0 %1601
    %1603 = vrot.lane.b32.xlu0 %v460, 32
    %v1604 = vpop.permute.xlu0 %1603
    %v1608 = vsel %vm468, %v1585, 0
    %1610 = vmatpush.msra.mxu0 0.0
    %1611 = vmatpush.msra.mxu0 0.0
    %1612 = vmatpush.msra.mxu0 0.0
    %1613 = vmatpush.msra.mxu0 0.0
    %1614 = vmatpush.msra.mxu0 0.0
    %1615 = vmatpush.msra.mxu0 0.0
    %1616 = vmatpush.msra.mxu0 0.0
    %1617 = vmatpush.msra.mxu0 0.0
    %1618 = vmatpush.msra.mxu0 0.0
    %1619 = vmatpush.msra.mxu0 0.0
    %1620 = vmatpush.msra.mxu0 0.0
    %1621 = vmatpush.msra.mxu0 0.0
    %1622 = vmatpush.msra.mxu0 0.0
    %1623 = vmatpush.msra.mxu0 0.0
    %1624 = vmatpush.msra.mxu0 %v1604
    %1625 = vmatpush.msra.mxu0 %v1602
    %1626 = vmatmul.f32.gmra.mxu0 %v1608
    %v1627 = vpop.f32.mrf.mxu0
    %v1628 = vadd.f32 0.0, %v1627
    %1629 = vdwg.mxu0
    %1630 = vrot.lane.b32.xlu0 %v463, 32
    %v1631 = vpop.permute.xlu0 %1630
    %1632 = vrot.lane.b32.xlu0 %v466, 32
    %v1633 = vpop.permute.xlu0 %1632
    %v1637 = vsel %vm468, %v1600, 0
    %1639 = vmatpush.msra.mxu0 0.0
    %1640 = vmatpush.msra.mxu0 0.0
    %1641 = vmatpush.msra.mxu0 0.0
    %1642 = vmatpush.msra.mxu0 0.0
    %1643 = vmatpush.msra.mxu0 0.0
    %1644 = vmatpush.msra.mxu0 0.0
    %1645 = vmatpush.msra.mxu0 0.0
    %1646 = vmatpush.msra.mxu0 0.0
    %1647 = vmatpush.msra.mxu0 0.0
    %1648 = vmatpush.msra.mxu0 0.0
    %1649 = vmatpush.msra.mxu0 0.0
    %1650 = vmatpush.msra.mxu0 0.0
    %1651 = vmatpush.msra.mxu0 0.0
    %1652 = vmatpush.msra.mxu0 0.0
    %1653 = vmatpush.msra.mxu0 %v1633
    %1654 = vmatpush.msra.mxu0 %v1631
    %1655 = vmatmul.f32.gmra.mxu0 %v1637
    %v1656 = vpop.f32.mrf.mxu0
    %v1657 = vadd.f32 0.0, %v1656
    %1658 = vdwg.mxu0
    %1659 = vrot.lane.b32.xlu0 %v365, 16
    %v1660 = vpop.permute.xlu0 %1659
    %1661 = vrot.lane.b32.xlu0 %v408, 16
    %v1662 = vpop.permute.xlu0 %1661
    %1663 = vrot.lane.b32.xlu0 %v411, 16
    %v1664 = vpop.permute.xlu0 %1663
    %v1665 = vsel %vm468, %v1660, 0
    %v1667 = vsel %vm468, %v1662, 0
    %v1669 = vsel %vm468, %v1664, 0
    %1671 = vmatpush.xpose.msra.mxu0 0.0
    %1672 = vmatpush.xpose.msra.mxu0 0.0
    %1673 = vmatpush.xpose.msra.mxu0 0.0
    %1674 = vmatpush.xpose.msra.mxu0 0.0
    %1675 = vmatpush.xpose.msra.mxu0 0.0
    %1676 = vmatpush.xpose.msra.mxu0 0.0
    %1677 = vmatpush.xpose.msra.mxu0 0.0
    %1678 = vmatpush.xpose.msra.mxu0 0.0
    %1679 = vmatpush.xpose.msra.mxu0 0.0
    %1680 = vmatpush.xpose.msra.mxu0 0.0
    %1681 = vmatpush.xpose.msra.mxu0 0.0
    %1682 = vmatpush.xpose.msra.mxu0 0.0
    %1683 = vmatpush.xpose.msra.mxu0 0.0
    %1684 = vmatpush.xpose.msra.mxu0 0.0
    %1685 = vmatpush.xpose.msra.mxu0 %v1669
    %1686 = vmatpush.xpose.msra.mxu0 %v1667
    %1687 = vmatmul.f32.gmra.mxu0 %v1665
    %v1688 = vpop.f32.mrf.mxu0
    %v1689 = vadd.f32 0.0, %v1688
    %1690 = vdwg.mxu0
    %1691 = vrot.lane.b32.xlu0 %v368, 16
    %v1692 = vpop.permute.xlu0 %1691
    %1693 = vrot.lane.b32.xlu0 %v414, 16
    %v1694 = vpop.permute.xlu0 %1693
    %1695 = vrot.lane.b32.xlu0 %v417, 16
    %v1696 = vpop.permute.xlu0 %1695
    %v1697 = vsel %vm468, %v1692, 0
    %v1699 = vsel %vm468, %v1694, 0
    %v1701 = vsel %vm468, %v1696, 0
    %1703 = vmatpush.xpose.msra.mxu0 0.0
    %1704 = vmatpush.xpose.msra.mxu0 0.0
    %1705 = vmatpush.xpose.msra.mxu0 0.0
    %1706 = vmatpush.xpose.msra.mxu0 0.0
    %1707 = vmatpush.xpose.msra.mxu0 0.0
    %1708 = vmatpush.xpose.msra.mxu0 0.0
    %1709 = vmatpush.xpose.msra.mxu0 0.0
    %1710 = vmatpush.xpose.msra.mxu0 0.0
    %1711 = vmatpush.xpose.msra.mxu0 0.0
    %1712 = vmatpush.xpose.msra.mxu0 0.0
    %1713 = vmatpush.xpose.msra.mxu0 0.0
    %1714 = vmatpush.xpose.msra.mxu0 0.0
    %1715 = vmatpush.xpose.msra.mxu0 0.0
    %1716 = vmatpush.xpose.msra.mxu0 0.0
    %1717 = vmatpush.xpose.msra.mxu0 %v1701
    %1718 = vmatpush.xpose.msra.mxu0 %v1699
    %1719 = vmatmul.f32.gmra.mxu0 %v1697
    %v1720 = vpop.f32.mrf.mxu0
    %v1721 = vadd.f32 0.0, %v1720
    %1722 = vdwg.mxu0
    %v1723 = vmul.f32 %v1689, 0.25
    %v1724 = vmul.f32 %v1721, 0.25
    %v1725 = vsel %vm468, %v1723, -inf
    %1726 = vmax.xlane.f32.xlu0 %v1725
    %v1727 = vpop.xlane.xlu0 %1726
    %v1728 = vsel %vm468, %v1724, -inf
    %1729 = vmax.xlane.f32.xlu0 %v1728
    %v1730 = vpop.xlane.xlu0 %1729
    %v1731 = vsub.f32 %v1723, %v1727
    %v1732 = vsub.f32 %v1724, %v1730
    %v1733 = vmul.f32 %v1731, 1.442695
    %v1734 = vpow.pop %v1733
    %v1735 = vmul.f32 %v1732, 1.442695
    %v1736 = vpow.pop %v1735
    %v1737 = vsel %vm468, %v1734, 0.0
    %1738 = vadd.xlane.f32.xlu0 %v1737
    %v1739 = vpop.xlane.xlu0 %1738
    %v1740 = vsel %vm468, %v1736, 0.0
    %1741 = vadd.xlane.f32.xlu0 %v1740
    %v1742 = vpop.xlane.xlu0 %1741
    %v1743 = vrcp.pop %v1739
    %v1744 = vmul.f32 %v1739, %v1743
    %v1745 = vsub.f32 1.0, %v1744
    %v1746 = vmul.f32 %v1743, %v1745
    %v1747 = vadd.f32 %v1743, %v1746
    %vm1748 = vweird.f32 %v1739
    %vm1749 = vweird.f32 %v1743
    %vm1750 = vmor %vm1748, %vm1749
    %v1751 = vsel %vm1750, %v1743, %v1747
    %v1752 = vand.u32 2147483647, %v1739
    %vm1753 = vcmp.eq.f32.partialorder %v1752, 8.507059e+37
    %v1754 = vand.u32 %v1739, 2147483648
    %v1755 = vor.u32 1.1754944e-38, %v1754
    %v1756 = vsel %vm1753, %v1755, %v1751
    %v1757 = vmul.f32 %v1734, %v1756
    %v1758 = vrcp.pop %v1742
    %v1759 = vmul.f32 %v1742, %v1758
    %v1760 = vsub.f32 1.0, %v1759
    %v1761 = vmul.f32 %v1758, %v1760
    %v1762 = vadd.f32 %v1758, %v1761
    %vm1763 = vweird.f32 %v1742
    %vm1764 = vweird.f32 %v1758
    %vm1765 = vmor %vm1763, %vm1764
    %v1766 = vsel %vm1765, %v1758, %v1762
    %v1767 = vand.u32 2147483647, %v1742
    %vm1768 = vcmp.eq.f32.partialorder %v1767, 8.507059e+37
    %v1769 = vand.u32 %v1742, 2147483648
    %v1770 = vor.u32 1.1754944e-38, %v1769
    %v1771 = vsel %vm1768, %v1770, %v1766
    %v1772 = vmul.f32 %v1736, %v1771
    %1773 = vrot.lane.b32.xlu0 %v457, 16
    %v1774 = vpop.permute.xlu0 %1773
    %1775 = vrot.lane.b32.xlu0 %v460, 16
    %v1776 = vpop.permute.xlu0 %1775
    %v1780 = vsel %vm468, %v1757, 0
    %1782 = vmatpush.msra.mxu0 0.0
    %1783 = vmatpush.msra.mxu0 0.0
    %1784 = vmatpush.msra.mxu0 0.0
    %1785 = vmatpush.msra.mxu0 0.0
    %1786 = vmatpush.msra.mxu0 0.0
    %1787 = vmatpush.msra.mxu0 0.0
    %1788 = vmatpush.msra.mxu0 0.0
    %1789 = vmatpush.msra.mxu0 0.0
    %1790 = vmatpush.msra.mxu0 0.0
    %1791 = vmatpush.msra.mxu0 0.0
    %1792 = vmatpush.msra.mxu0 0.0
    %1793 = vmatpush.msra.mxu0 0.0
    %1794 = vmatpush.msra.mxu0 0.0
    %1795 = vmatpush.msra.mxu0 0.0
    %1796 = vmatpush.msra.mxu0 %v1776
    %1797 = vmatpush.msra.mxu0 %v1774
    %1798 = vmatmul.f32.gmra.mxu0 %v1780
    %v1799 = vpop.f32.mrf.mxu0
    %v1800 = vadd.f32 0.0, %v1799
    %1801 = vdwg.mxu0
    %1802 = vrot.lane.b32.xlu0 %v463, 16
    %v1803 = vpop.permute.xlu0 %1802
    %1804 = vrot.lane.b32.xlu0 %v466, 16
    %v1805 = vpop.permute.xlu0 %1804
    %v1809 = vsel %vm468, %v1772, 0
    %1811 = vmatpush.msra.mxu0 0.0
    %1812 = vmatpush.msra.mxu0 0.0
    %1813 = vmatpush.msra.mxu0 0.0
    %1814 = vmatpush.msra.mxu0 0.0
    %1815 = vmatpush.msra.mxu0 0.0
    %1816 = vmatpush.msra.mxu0 0.0
    %1817 = vmatpush.msra.mxu0 0.0
    %1818 = vmatpush.msra.mxu0 0.0
    %1819 = vmatpush.msra.mxu0 0.0
    %1820 = vmatpush.msra.mxu0 0.0
    %1821 = vmatpush.msra.mxu0 0.0
    %1822 = vmatpush.msra.mxu0 0.0
    %1823 = vmatpush.msra.mxu0 0.0
    %1824 = vmatpush.msra.mxu0 0.0
    %1825 = vmatpush.msra.mxu0 %v1805
    %1826 = vmatpush.msra.mxu0 %v1803
    %1827 = vmatmul.f32.gmra.mxu0 %v1809
    %v1828 = vpop.f32.mrf.mxu0
    %v1829 = vadd.f32 0.0, %v1828
    %1830 = vdwg.mxu0
    %1833 = vrot.lane.b32.xlu0 %v766, 16
    %v1834 = vpop.permute.xlu0 %1833
    %1835 = vrot.lane.b32.xlu0 %v797, 16
    %v1836 = vpop.permute.xlu0 %1835
    %1841 = vrot.lane.b32.xlu0 %v940, 32
    %v1842 = vpop.permute.xlu0 %1841
    %1843 = vrot.lane.b32.xlu0 %v969, 32
    %v1844 = vpop.permute.xlu0 %1843
    %1849 = vrot.lane.b32.xlu0 %v1112, 48
    %v1850 = vpop.permute.xlu0 %1849
    %1851 = vrot.lane.b32.xlu0 %v1141, 48
    %v1852 = vpop.permute.xlu0 %1851
    %1857 = vrot.lane.b32.xlu0 %v1284, 64
    %v1858 = vpop.permute.xlu0 %1857
    %1859 = vrot.lane.b32.xlu0 %v1313, 64
    %v1860 = vpop.permute.xlu0 %1859
    %1865 = vrot.lane.b32.xlu0 %v1456, 80
    %v1866 = vpop.permute.xlu0 %1865
    %1867 = vrot.lane.b32.xlu0 %v1485, 80
    %v1868 = vpop.permute.xlu0 %1867
    %1873 = vrot.lane.b32.xlu0 %v1628, 96
    %v1874 = vpop.permute.xlu0 %1873
    %1875 = vrot.lane.b32.xlu0 %v1657, 96
    %v1876 = vpop.permute.xlu0 %1875
    %1881 = vrot.lane.b32.xlu0 %v1800, 112
    %v1882 = vpop.permute.xlu0 %1881
    %1883 = vrot.lane.b32.xlu0 %v1829, 112
    %v1884 = vpop.permute.xlu0 %1883
    %v1887 = vsel %vm468, %v598, %v1834
    %v1888 = vsel %vm468, %v621, %v1836
    %v1889 = vsel %vm154, %v1887, %v1842
    %v1890 = vsel %vm154, %v1888, %v1844
    %vm1891 = vcmask 392192
    %v1892 = vsel %vm1891, %v1889, %v1850
    %v1893 = vsel %vm1891, %v1890, %v1852
    %vm1894 = vcmask 523264
    %v1895 = vsel %vm1894, %v1892, %v1858
    %v1896 = vsel %vm1894, %v1893, %v1860
    %vm1897 = vcmask 654336
    %v1898 = vsel %vm1897, %v1895, %v1866
    %v1899 = vsel %vm1897, %v1896, %v1868
    %vm1900 = vcmask 785408
    %v1901 = vsel %vm1900, %v1898, %v1874
    %v1902 = vsel %vm1900, %v1899, %v1876
    %vm1903 = vcmask 916480
    %v1904 = vsel %vm1903, %v1901, %v1882
    %v1905 = vsel %vm1903, %v1902, %v1884
    %v1906 = vld [vmem:[%s18] sm:$0xff]
    %v1907 = vld [vmem:[%s18 + $0x8] sm:$0xff]
    %v1908 = vld [vmem:[%s18 + $0x10] sm:$0xff]
    %v1909 = vld [vmem:[%s18 + $0x18] sm:$0xff]
    %v1910 = vld [vmem:[%s18 + $0x20] sm:$0xff]
    %v1911 = vld [vmem:[%s18 + $0x28] sm:$0xff]
    %v1912 = vld [vmem:[%s18 + $0x30] sm:$0xff]
    %v1913 = vld [vmem:[%s18 + $0x38] sm:$0xff]
    %v1914 = vld [vmem:[%s18 + $0x40] sm:$0xff]
    %v1915 = vld [vmem:[%s18 + $0x48] sm:$0xff]
    %v1916 = vld [vmem:[%s18 + $0x50] sm:$0xff]
    %v1917 = vld [vmem:[%s18 + $0x58] sm:$0xff]
    %v1918 = vld [vmem:[%s18 + $0x60] sm:$0xff]
    %v1919 = vld [vmem:[%s18 + $0x68] sm:$0xff]
    %v1920 = vld [vmem:[%s18 + $0x70] sm:$0xff]
    %v1921 = vld [vmem:[%s18 + $0x78] sm:$0xff]
    %v1922 = vld [vmem:[%s19] sm:$0x1]
    %v1924 = vperm.slane %v1922, 0
    %1926 = vmatpush.msra.mxu0 %v1921
    %1927 = vmatpush.msra.mxu0 %v1920
    %1928 = vmatpush.msra.mxu0 %v1919
    %1929 = vmatpush.msra.mxu0 %v1918
    %1930 = vmatpush.msra.mxu0 %v1917
    %1931 = vmatpush.msra.mxu0 %v1916
    %1932 = vmatpush.msra.mxu0 %v1915
    %1933 = vmatpush.msra.mxu0 %v1914
    %1934 = vmatpush.msra.mxu0 %v1913
    %1935 = vmatpush.msra.mxu0 %v1912
    %1936 = vmatpush.msra.mxu0 %v1911
    %1937 = vmatpush.msra.mxu0 %v1910
    %1938 = vmatpush.msra.mxu0 %v1909
    %1939 = vmatpush.msra.mxu0 %v1908
    %1940 = vmatpush.msra.mxu0 %v1907
    %1941 = vmatpush.msra.mxu0 %v1906
    %1942 = vmatmul.f32.gmra.mxu0 %v1904
    %v1943 = vpop.f32.mrf.mxu0
    %v1944 = vadd.f32 %v1924, %v1943
    %1945 = vmatmul.f32.gmra.mxu0 %v1905
    %v1946 = vpop.f32.mrf.mxu0
    %v1947 = vadd.f32 %v1924, %v1946
    %1948 = vdwg.mxu0
    %v1949 = vadd.f32 %v1944, %v264
    %v1950 = vadd.f32 %v1947, %v265
    %1951 = vadd.xlane.f32.xlu0 %v1949
    %v1952 = vpop.xlane.xlu0 %1951
    %1953 = vadd.xlane.f32.xlu0 %v1950
    %v1954 = vpop.xlane.xlu0 %1953
    %v1955 = vrcp.pop 128.0
    %v1956 = vmul.f32 128.0, %v1955
    %v1957 = vsub.f32 1.0, %v1956
    %v1958 = vmul.f32 %v1955, %v1957
    %v1959 = vadd.f32 %v1955, %v1958
    %vm1960 = vweird.f32 %v1955
    %v1961 = vsel %vm1960, %v1955, %v1959
    %v1962 = vmul.f32 %v1952, %v1961
    %v1963 = vmul.f32 %v1954, %v1961
    %v1964 = vsub.f32 %v1949, %v1962
    %v1965 = vsub.f32 %v1950, %v1963
    %v1966 = vmul.f32 %v1964, %v1964
    %v1967 = vmul.f32 %v1965, %v1965
    %1968 = vadd.xlane.f32.xlu0 %v1966
    %v1969 = vpop.xlane.xlu0 %1968
    %1970 = vadd.xlane.f32.xlu0 %v1967
    %v1971 = vpop.xlane.xlu0 %1970
    %v1972 = vmul.f32 %v1969, %v1961
    %v1973 = vmul.f32 %v1971, %v1961
    %v1974 = vadd.f32 %v1972, 1e-05
    %v1975 = vadd.f32 %v1973, 1e-05
    %v1976 = vrsqrt.pop %v1974
    %v1977 = vmul.f32 %v1976, %v1974
    %v1978 = vmul.f32 %v1977, %v1976
    %v1979 = vmul.f32 0.5, %v1978
    %v1980 = vsub.f32 1.5, %v1979
    %v1981 = vmul.f32 %v1976, %v1980
    %vm1982 = vweird.f32 %v1974
    %vm1983 = vweird.f32 %v1976
    %vm1984 = vmor %vm1982, %vm1983
    %v1985 = vsel %vm1984, %v1976, %v1981
    %v1986 = vrsqrt.pop %v1975
    %v1987 = vmul.f32 %v1986, %v1975
    %v1988 = vmul.f32 %v1987, %v1986
    %v1989 = vmul.f32 0.5, %v1988
    %v1990 = vsub.f32 1.5, %v1989
    %v1991 = vmul.f32 %v1986, %v1990
    %vm1992 = vweird.f32 %v1975
    %vm1993 = vweird.f32 %v1986
    %vm1994 = vmor %vm1992, %vm1993
    %v1995 = vsel %vm1994, %v1986, %v1991
    %v1996 = vmul.f32 %v1964, %v1985
    %v1997 = vmul.f32 %v1965, %v1995
    %v1998 = vld [vmem:[%s20] sm:$0x1]
    %v2000 = vperm.slane %v1998, 0
    %v2002 = vmul.f32 %v1996, %v2000
    %v2003 = vmul.f32 %v1997, %v2000
    %v2004 = vld [vmem:[%s21] sm:$0x1]
    %v2006 = vperm.slane %v2004, 0
    %v2008 = vadd.f32 %v2002, %v2006
    %v2009 = vadd.f32 %v2003, %v2006
    %v2010 = vld [vmem:[%s22] sm:$0xff]
    %v2011 = vld [vmem:[%s22 + $0x8] sm:$0xff]
    %v2012 = vld [vmem:[%s22 + $0x10] sm:$0xff]
    %v2013 = vld [vmem:[%s22 + $0x18] sm:$0xff]
    %v2014 = vld [vmem:[%s22 + $0x20] sm:$0xff]
    %v2015 = vld [vmem:[%s22 + $0x28] sm:$0xff]
    %v2016 = vld [vmem:[%s22 + $0x30] sm:$0xff]
    %v2017 = vld [vmem:[%s22 + $0x38] sm:$0xff]
    %v2018 = vld [vmem:[%s22 + $0x40] sm:$0xff]
    %v2019 = vld [vmem:[%s22 + $0x48] sm:$0xff]
    %v2020 = vld [vmem:[%s22 + $0x50] sm:$0xff]
    %v2021 = vld [vmem:[%s22 + $0x58] sm:$0xff]
    %v2022 = vld [vmem:[%s22 + $0x60] sm:$0xff]
    %v2023 = vld [vmem:[%s22 + $0x68] sm:$0xff]
    %v2024 = vld [vmem:[%s22 + $0x70] sm:$0xff]
    %v2025 = vld [vmem:[%s22 + $0x78] sm:$0xff]
    %v2026 = vld [vmem:[%s23] sm:$0x1]
    %v2028 = vperm.slane %v2026, 0
    %2030 = vmatpush.msra.mxu0 %v2025
    %2031 = vmatpush.msra.mxu0 %v2024
    %2032 = vmatpush.msra.mxu0 %v2023
    %2033 = vmatpush.msra.mxu0 %v2022
    %2034 = vmatpush.msra.mxu0 %v2021
    %2035 = vmatpush.msra.mxu0 %v2020
    %2036 = vmatpush.msra.mxu0 %v2019
    %2037 = vmatpush.msra.mxu0 %v2018
    %2038 = vmatpush.msra.mxu0 %v2017
    %2039 = vmatpush.msra.mxu0 %v2016
    %2040 = vmatpush.msra.mxu0 %v2015
    %2041 = vmatpush.msra.mxu0 %v2014
    %2042 = vmatpush.msra.mxu0 %v2013
    %2043 = vmatpush.msra.mxu0 %v2012
    %2044 = vmatpush.msra.mxu0 %v2011
    %2045 = vmatpush.msra.mxu0 %v2010
    %2046 = vmatmul.f32.gmra.mxu0 %v2008
    %v2047 = vpop.f32.mrf.mxu0
    %v2048 = vadd.f32 %v2028, %v2047
    %2049 = vmatmul.f32.gmra.mxu0 %v2009
    %v2050 = vpop.f32.mrf.mxu0
    %v2051 = vadd.f32 %v2028, %v2050
    %2052 = vdwg.mxu0
    %v2053 = vmax.f32 %v2048, 0.0
    %v2054 = vmax.f32 %v2051, 0.0
    %v2055 = vld [vmem:[%s24] sm:$0xff]
    %v2056 = vld [vmem:[%s24 + $0x8] sm:$0xff]
    %v2057 = vld [vmem:[%s24 + $0x10] sm:$0xff]
    %v2058 = vld [vmem:[%s24 + $0x18] sm:$0xff]
    %v2059 = vld [vmem:[%s25] sm:$0x1]
    %v2061 = vperm.slane %v2059, 0
    %v2064 = vsel %vm154, %v2053, 0
    %v2067 = vsel %vm154, %v2054, 0
    %2069 = vmatpush.msra.mxu0 0.0
    %2070 = vmatpush.msra.mxu0 0.0
    %2071 = vmatpush.msra.mxu0 0.0
    %2072 = vmatpush.msra.mxu0 0.0
    %2073 = vmatpush.msra.mxu0 0.0
    %2074 = vmatpush.msra.mxu0 0.0
    %2075 = vmatpush.msra.mxu0 0.0
    %2076 = vmatpush.msra.mxu0 0.0
    %2077 = vmatpush.msra.mxu0 0.0
    %2078 = vmatpush.msra.mxu0 0.0
    %2079 = vmatpush.msra.mxu0 0.0
    %2080 = vmatpush.msra.mxu0 0.0
    %2081 = vmatpush.msra.mxu0 %v2058
    %2082 = vmatpush.msra.mxu0 %v2057
    %2083 = vmatpush.msra.mxu0 %v2056
    %2084 = vmatpush.msra.mxu0 %v2055
    %2085 = vmatmul.f32.gmra.mxu0 %v2064
    %v2086 = vpop.f32.mrf.mxu0
    %v2087 = vadd.f32 %v2061, %v2086
    %2088 = vmatmul.f32.gmra.mxu0 %v2067
    %v2089 = vpop.f32.mrf.mxu0
    %v2090 = vadd.f32 %v2061, %v2089
    %2091 = vdwg.mxu0
    %v2092 = vadd.f32 %v2087, %v2008
    %v2093 = vadd.f32 %v2090, %v2009
    %2094 = vadd.xlane.f32.xlu0 %v2092
    %v2095 = vpop.xlane.xlu0 %2094
    %2096 = vadd.xlane.f32.xlu0 %v2093
    %v2097 = vpop.xlane.xlu0 %2096
    %v2098 = vmul.f32 %v2095, %v1961
    %v2099 = vmul.f32 %v2097, %v1961
    %v2100 = vsub.f32 %v2092, %v2098
    %v2101 = vsub.f32 %v2093, %v2099
    %v2102 = vmul.f32 %v2100, %v2100
    %v2103 = vmul.f32 %v2101, %v2101
    %2104 = vadd.xlane.f32.xlu0 %v2102
    %v2105 = vpop.xlane.xlu0 %2104
    %2106 = vadd.xlane.f32.xlu0 %v2103
    %v2107 = vpop.xlane.xlu0 %2106
    %v2108 = vmul.f32 %v2105, %v1961
    %v2109 = vmul.f32 %v2107, %v1961
    %v2110 = vadd.f32 %v2108, 1e-05
    %v2111 = vadd.f32 %v2109, 1e-05
    %v2112 = vrsqrt.pop %v2110
    %v2113 = vmul.f32 %v2112, %v2110
    %v2114 = vmul.f32 %v2113, %v2112
    %v2115 = vmul.f32 0.5, %v2114
    %v2116 = vsub.f32 1.5, %v2115
    %v2117 = vmul.f32 %v2112, %v2116
    %vm2118 = vweird.f32 %v2110
    %vm2119 = vweird.f32 %v2112
    %vm2120 = vmor %vm2118, %vm2119
    %v2121 = vsel %vm2120, %v2112, %v2117
    %v2122 = vrsqrt.pop %v2111
    %v2123 = vmul.f32 %v2122, %v2111
    %v2124 = vmul.f32 %v2123, %v2122
    %v2125 = vmul.f32 0.5, %v2124
    %v2126 = vsub.f32 1.5, %v2125
    %v2127 = vmul.f32 %v2122, %v2126
    %vm2128 = vweird.f32 %v2111
    %vm2129 = vweird.f32 %v2122
    %vm2130 = vmor %vm2128, %vm2129
    %v2131 = vsel %vm2130, %v2122, %v2127
    %v2132 = vmul.f32 %v2100, %v2121
    %v2133 = vmul.f32 %v2101, %v2131
    %v2134 = vld [vmem:[%s26] sm:$0x1]
    %v2136 = vperm.slane %v2134, 0
    %v2138 = vmul.f32 %v2132, %v2136
    %v2139 = vmul.f32 %v2133, %v2136
    %v2140 = vld [vmem:[%s27] sm:$0x1]
    %v2142 = vperm.slane %v2140, 0
    %v2144 = vadd.f32 %v2138, %v2142
    %v2145 = vadd.f32 %v2139, %v2142
    %v2146 = vadd.f32 %v2144, %v2145
    %v2147 = vmul.f32 %v2146, 0.5
    %2148 = vst [vmem:[#allocation5] sm:$0xff] %v2147
    // Predicated region
    $region118: #{prompt_modulator_with_attention.1} parent=1 // pred_check
      _
    $region119: #{prompt_modulator_with_attention.1} parent=1 // pred_check_branch
      %2150 = sbr.rel (0) target = $region121
    $region120: #{prompt_modulator_with_attention.1} parent=1 // pred_region
      %2152 = vsyncadd [#allocation3], 0
      %s2154 = sshll.u32 [#allocation5], 4
      %s2155 = int_to_ptr.vmem [resolvable:$true] %s2154
      %s2156 = sshll.u32 %s28, 4
      %s2157 = int_to_ptr.hbm [resolvable:$true] %s2156
      %2159 = dma.vmem_to_hbm [thread:$0]  %s2155, 128, %s2157, [#allocation3]
    $region121: #{prompt_modulator_with_attention.1} parent=1 // pred_fallthru
      _
    // Predicated region
    $region122: #{prompt_modulator_with_attention.1} parent=1 // pred_check
      _
    $region123: #{prompt_modulator_with_attention.1} parent=1 // pred_check_branch
      %2161 = sbr.rel (0) target = $region125
    $region124: #{prompt_modulator_with_attention.1} parent=1 // pred_region
      %2163 = dma.done [#allocation3], 128
    $region125: #{prompt_modulator_with_attention.1} parent=1 // pred_fallthru
      _
    %2164 = vsyncpa [#allocation3], 1
    %2165 = vsyncpa [#allocation4], 1

</llo_original>
